<compile_context>
chip_gen: v7x
topology: tpu7x:2x2x1
jax: 0.10.0
libtpu: 0.0.40
codegen_flags: <defaults>
</compile_context>

<pallas_src>
import functools

import numpy as np
import jax
import jax.numpy as jnp
from jax import lax
from jax.experimental import pallas as pl
from jax.experimental.pallas import tpu as pltpu


FC_CHUNKS = 4   # number of FC-weight DMA chunks == number of FC chunk-dots


# ---------------------------------------------------------------------------
# One-time parameter re-layout (hoisted out of the forward path).
# Activation layout inside the kernel:
#   row index  = c * B + b          (channel-major, batch minor)
#   lane index = flattened zero-padded pixel (p = h * (W+2) + w)
# ---------------------------------------------------------------------------
def prepare_params(params, *, batch, height, width):
    w1, b1, w2, b2, wf, bf = params
    B, H, W = batch, height, width
    Wp = W + 2
    C1, C2 = w1.shape[0], w2.shape[0]
    hidden = wf.shape[0]
    # Geometry assumptions of this kernel (hold for the 10x10 maze):
    assert H * Wp <= 128, "one conv2 output channel must fit a single 128-lane tile"
    assert 2 * Wp + 2 + 128 <= (H + 3) * Wp, "conv2 tap window must fit in conv1 output"
    assert (C2 * 128) % FC_CHUNKS == 0

    eye_b = jnp.eye(B, dtype=jnp.float32)

    def stacked_taps(w_oihw):
        # (O, I, 3, 3) -> (O*B, 9*I*B): per-tap (W_k (x) I_B) blocks stacked along K,
        # so a whole 3x3 conv over all B images is a SINGLE bf16 MXU matmul.
        taps = [jnp.kron(w_oihw[:, :, kh, kw].astype(jnp.float32), eye_b)
                for kh in range(3) for kw in range(3)]
        return jnp.concatenate(taps, axis=1).astype(jnp.bfloat16)

    w1s = stacked_taps(w1)                                        # (C1*B, 9*1*B)
    w2s = stacked_taps(w2)                                        # (C2*B, 9*C1*B)
    b1k = jnp.repeat(b1.astype(jnp.float32), B).reshape(-1, 1)    # (C1*B, 1)
    b2k = jnp.repeat(b2.astype(jnp.float32), B).reshape(-1, 1)    # (C2*B, 1)

    # FC weight: torch flattens NCHW as (c, h, w).  Re-lay rows as (c*128 + h*Wp + w)
    # with zero rows at pad columns (w >= W) and at the 128-lane tail, matching the
    # kernel's lane-dense (B, C2*128) conv2-output layout; split into DMA chunks.
    wf3 = wf.reshape(hidden, C2, H, W).transpose(1, 2, 3, 0)      # (c, h, w, n)
    wf3 = jnp.pad(wf3, ((0, 0), (0, 0), (0, Wp - W), (0, 0)))     # (c, h, Wp, n)
    wf3 = wf3.reshape(C2, H * Wp, hidden)
    wf4 = jnp.pad(wf3, ((0, 0), (0, 128 - H * Wp), (0, 0)))       # (c, 128, n)
    wf4 = wf4.reshape(FC_CHUNKS, C2 * 128 // FC_CHUNKS, hidden).astype(jnp.bfloat16)
    bfc = bf.reshape(1, hidden).astype(jnp.float32)

    # conv1-output validity mask: lane q holds conv1 output pixel p1 = q - (Wp+1);
    # pad / out-of-range lanes must be zeroed before they feed conv2.
    p1w = (H + 3) * Wp
    p1 = np.arange(p1w) - (Wp + 1)
    valid = (p1 >= 0) & (p1 % Wp < W) & (p1 // Wp < H)
    mask1 = jnp.asarray(valid.astype(np.float32)).reshape(1, p1w)

    return (w1s, b1k, w2s, b2k, wf4, bfc, mask1)


# ---------------------------------------------------------------------------
# The fused kernel.
# ---------------------------------------------------------------------------
def _perception_fused_kernel(x1_ref, mask1_ref, w1s_ref, b1k_ref, w2s_ref, b2k_ref,
                             bfc_ref, wf4_hbm, out_ref,
                             wf4_vmem, x_taps, h1_taps, fc_lhs, wf_sem,
                             *, B, H, W):
    Wp = W + 2
    p1w = (H + 3) * Wp          # conv1 output width == conv2 padded-input width
    p2w = 128                   # conv2 output width (lane-tile padded; junk lanes are
                                # cancelled by zero rows of the FC weight)
    c1b = w1s_ref.shape[0]      # C1 * B
    c2 = b2k_ref.shape[0] // B  # conv2 output channels
    n_chunks = wf4_vmem.shape[0]
    kc = fc_lhs.shape[1] // n_chunks

    # Kick off the only large DMA (FC weight, ~1 MiB bf16) in chunks; each chunk is
    # awaited right before its FC chunk-dot, so HBM->VMEM overlaps the convs and the
    # earlier FC chunks on every TPU generation.
    def wf_chunk_copy(t):
        return pltpu.make_async_copy(wf4_hbm.at[t], wf4_vmem.at[t], wf_sem.at[t])

    for t in range(n_chunks):
        wf_chunk_copy(t).start()

    # ---- conv1: stack the 9 shifted input views along K, then ONE bf16 matmul ----
    x1 = x1_ref[...]                                              # (B, 183) f32
    for k in range(9):
        off = (k // 3) * Wp + (k % 3)
        x_taps[k * B:(k + 1) * B, :] = x1[:, off:off + p1w]
    h1 = jnp.dot(w1s_ref[...], x_taps[...].astype(jnp.bfloat16),
                 preferred_element_type=jnp.float32)              # (C1*B, p1w)
    h1 = jnp.maximum(h1 + b1k_ref[...], 0.0) * mask1_ref[...]
    h1 = h1.astype(jnp.bfloat16)

    # ---- conv2: same K-stacking trick (K = 9*C1*B), one bf16 matmul --------------
    for k in range(9):
        off = (k // 3) * Wp + (k % 3)
        h1_taps[k * c1b:(k + 1) * c1b, :] = h1[:, off:off + p2w]
    h2 = jnp.dot(w2s_ref[...], h1_taps[...],
                 preferred_element_type=jnp.float32)              # (C2*B, 128)
    h2 = jnp.maximum(h2 + b2k_ref[...], 0.0)

    # ---- "flatten": re-lay conv2 output lane-dense per image ---------------------
    # fc_lhs[b, c*128 + q] = h2[c*B + b, q]; pad/junk pixels hit zero FC-weight rows.
    for c in range(c2):
        fc_lhs[:, c * p2w:(c + 1) * p2w] = h2[c * B:(c + 1) * B, :]

    # ---- FC: long-K bf16 chunk dots with f32 accumulation ------------------------
    out = bfc_ref[...]                                            # (1, hidden), broadcasts
    for t in range(n_chunks):
        wf_chunk_copy(t).wait()
        out = out + jnp.dot(fc_lhs[:, t * kc:(t + 1) * kc].astype(jnp.bfloat16),
                            wf4_vmem[t], preferred_element_type=jnp.float32)
    out_ref[...] = out


# ---------------------------------------------------------------------------
# Forward pass equivalent to PerceptionLayer.forward (input is NCHW like torch).
# ---------------------------------------------------------------------------
@jax.jit
def perception_layer_pallas(x_nchw, prep):
    w1s, b1k, w2s, b2k, wf4, bfc, mask1 = prep
    B, _, H, W = x_nchw.shape
    Wp = W + 2
    hidden = wf4.shape[-1]
    c1b = w1s.shape[0]
    c2 = b2k.shape[0] // B

    # Tiny XLA glue (~1.5 KB): flatten the zero-padded image row-major and left-pad
    # by Wp+1 so every 3x3 tap becomes a static lane shift inside the kernel.
    x_pad = jnp.pad(x_nchw[:, 0].astype(jnp.float32), ((0, 0), (1, 1), (1, 1)))
    x1 = jnp.pad(x_pad.reshape(B, (H + 2) * Wp), ((0, 0), (Wp + 1, 2 * Wp + 2)))

    kernel = functools.partial(_perception_fused_kernel, B=B, H=H, W=W)
    vmem = pltpu.MemorySpace.VMEM
    return pl.pallas_call(
        kernel,
        out_shape=jax.ShapeDtypeStruct((B, hidden), jnp.float32),
        in_specs=[pl.BlockSpec(memory_space=vmem)] * 7
                 + [pl.BlockSpec(memory_space=pl.ANY)],       # FC weight stays in HBM
        out_specs=pl.BlockSpec(memory_space=vmem),
        scratch_shapes=[
            pltpu.VMEM(wf4.shape, wf4.dtype),                 # FC-weight landing buffer
            pltpu.VMEM((9 * B, (H + 3) * Wp), jnp.float32),   # conv1 K-stack
            pltpu.VMEM((9 * c1b, 128), jnp.bfloat16),         # conv2 K-stack
            pltpu.VMEM((B, c2 * 128), jnp.float32),           # lane-dense FC lhs
            pltpu.SemaphoreType.DMA((wf4.shape[0],)),         # per-chunk DMA semaphores
        ],
    )(x1, mask1, w1s, b1k, w2s, b2k, bfc, wf4)


# ---------------------------------------------------------------------------
# Pure-JAX reference (same semantics as the PyTorch module) for validation.
# ---------------------------------------------------------------------------
def perception_layer_reference(x, params):
    w1, b1, w2, b2, wf, bf = params
    dn = ('NCHW', 'OIHW', 'NCHW')
    h = lax.conv_general_dilated(x, w1, (1, 1), 'SAME', dimension_numbers=dn,
                                 precision=lax.Precision.HIGHEST)
    h = jax.nn.relu(h + b1.reshape(1, -1, 1, 1))
    h = lax.conv_general_dilated(h, w2, (1, 1), 'SAME', dimension_numbers=dn,
                                 precision=lax.Precision.HIGHEST)
    h = jax.nn.relu(h + b2.reshape(1, -1, 1, 1))
    h = h.reshape(h.shape[0], -1)
    return jnp.dot(h, wf.T, precision=lax.Precision.HIGHEST) + bf


if __name__ == "__main__":
    key = jax.random.PRNGKey(0)
    B, H, W = 2, 10, 10          # maze_size = (10, 10), single input channel
    hidden_dim = 128

    ks = jax.random.split(key, 7)
    x = jax.random.normal(ks[0], (B, 1, H, W), jnp.float32)
    # Deterministic synthetic parameters (PyTorch shapes: OIHW convs, (out,in) fc).
    w1 = 0.1 * jax.random.normal(ks[1], (16, 1, 3, 3), jnp.float32)
    b1 = 0.1 * jax.random.normal(ks[2], (16,), jnp.float32)
    w2 = 0.1 * jax.random.normal(ks[3], (32, 16, 3, 3), jnp.float32)
    b2 = 0.1 * jax.random.normal(ks[4], (32,), jnp.float32)
    wf = 0.05 * jax.random.normal(ks[5], (hidden_dim, H * W * 32), jnp.float32)
    bf = 0.05 * jax.random.normal(ks[6], (hidden_dim,), jnp.float32)
    params = (w1, b1, w2, b2, wf, bf)

    # One-time weight re-layout (hoisted out of the forward path).
    prep = jax.tree_util.tree_map(jax.block_until_ready,
                                  prepare_params(params, batch=B, height=H, width=W))

    y = jax.block_until_ready(perception_layer_pallas(x, prep))
    y_ref = perception_layer_reference(x, params)

    assert y.shape == (B, hidden_dim)
    # bf16 MXU operands with f32 accumulation: tolerance loosened vs the all-f32 version.
    max_err = float(jnp.max(jnp.abs(y - y_ref)))
    if max_err < 3e-2:
        print("KERNEL_OK")
    else:
        raise SystemExit(f"mismatch: max abs err {max_err}")
</pallas_src>

<mosaic_0001>
module attributes {stable_mosaic.version = 11 : i64} {
  func.func @_perception_fused_kernel(%arg0: memref<2x183xf32, #tpu.memory_space<vmem>>, %arg1: memref<1x156xf32, #tpu.memory_space<vmem>>, %arg2: memref<32x18xbf16, #tpu.memory_space<vmem>>, %arg3: memref<32x1xf32, #tpu.memory_space<vmem>>, %arg4: memref<64x288xbf16, #tpu.memory_space<vmem>>, %arg5: memref<64x1xf32, #tpu.memory_space<vmem>>, %arg6: memref<1x128xf32, #tpu.memory_space<vmem>>, %arg7: memref<4x1024x128xbf16, #tpu.memory_space<any>>, %arg8: memref<2x128xf32, #tpu.memory_space<vmem>>, %arg9: memref<4x1024x128xbf16, #tpu.memory_space<vmem>>, %arg10: memref<18x156xf32, #tpu.memory_space<vmem>>, %arg11: memref<288x128xbf16, #tpu.memory_space<vmem>>, %arg12: memref<2x4096xf32, #tpu.memory_space<vmem>>, %arg13: memref<4x!tpu.dma_semaphore, #tpu.memory_space<semaphore_mem>>) attributes {dimension_semantics = [], scalar_prefetch = 0 : i64, scratch_operands = 5 : i64, tpu.core_type = #tpu.core_type<tc>} {
    %c0_i32 = arith.constant 0 : i32
    %c0_i32_0 = arith.constant 0 : i32
    %c0_i32_1 = arith.constant 0 : i32
    %c0_i32_2 = arith.constant 0 : i32
    %c0_i32_3 = arith.constant 0 : i32
    %0 = tpu.memref_slice %arg7[%c0_i32, %c0_i32_2, %c0_i32_3] : memref<4x1024x128xbf16, #tpu.memory_space<any>> -> memref<1x1024x128xbf16, #tpu.memory_space<any>>
    %1 = tpu.memref_squeeze %0 : memref<1x1024x128xbf16, #tpu.memory_space<any>> -> memref<1024x128xbf16, #tpu.memory_space<any>>
    %c0_i32_4 = arith.constant 0 : i32
    %c0_i32_5 = arith.constant 0 : i32
    %2 = tpu.memref_slice %arg9[%c0_i32_0, %c0_i32_4, %c0_i32_5] : memref<4x1024x128xbf16, #tpu.memory_space<vmem>> -> memref<1x1024x128xbf16, #tpu.memory_space<vmem>>
    %3 = tpu.memref_squeeze %2 : memref<1x1024x128xbf16, #tpu.memory_space<vmem>> -> memref<1024x128xbf16, #tpu.memory_space<vmem>>
    %4 = tpu.memref_slice %arg13[%c0_i32_1] : memref<4x!tpu.dma_semaphore, #tpu.memory_space<semaphore_mem>> -> memref<1x!tpu.dma_semaphore, #tpu.memory_space<semaphore_mem>>
    %5 = tpu.memref_squeeze %4 : memref<1x!tpu.dma_semaphore, #tpu.memory_space<semaphore_mem>> -> memref<!tpu.dma_semaphore, #tpu.memory_space<semaphore_mem>>
    tpu.enqueue_dma source(%1 : memref<1024x128xbf16, #tpu.memory_space<any>>) target(%3 : memref<1024x128xbf16, #tpu.memory_space<vmem>>) target_semaphore(%5 : memref<!tpu.dma_semaphore, #tpu.memory_space<semaphore_mem>>)
    %c1_i32 = arith.constant 1 : i32
    %c1_i32_6 = arith.constant 1 : i32
    %c1_i32_7 = arith.constant 1 : i32
    %c0_i32_8 = arith.constant 0 : i32
    %c0_i32_9 = arith.constant 0 : i32
    %6 = tpu.memref_slice %arg7[%c1_i32, %c0_i32_8, %c0_i32_9] : memref<4x1024x128xbf16, #tpu.memory_space<any>> -> memref<1x1024x128xbf16, #tpu.memory_space<any>>
    %7 = tpu.memref_squeeze %6 : memref<1x1024x128xbf16, #tpu.memory_space<any>> -> memref<1024x128xbf16, #tpu.memory_space<any>>
    %c0_i32_10 = arith.constant 0 : i32
    %c0_i32_11 = arith.constant 0 : i32
    %8 = tpu.memref_slice %arg9[%c1_i32_6, %c0_i32_10, %c0_i32_11] : memref<4x1024x128xbf16, #tpu.memory_space<vmem>> -> memref<1x1024x128xbf16, #tpu.memory_space<vmem>>
    %9 = tpu.memref_squeeze %8 : memref<1x1024x128xbf16, #tpu.memory_space<vmem>> -> memref<1024x128xbf16, #tpu.memory_space<vmem>>
    %10 = tpu.memref_slice %arg13[%c1_i32_7] : memref<4x!tpu.dma_semaphore, #tpu.memory_space<semaphore_mem>> -> memref<1x!tpu.dma_semaphore, #tpu.memory_space<semaphore_mem>>
    %11 = tpu.memref_squeeze %10 : memref<1x!tpu.dma_semaphore, #tpu.memory_space<semaphore_mem>> -> memref<!tpu.dma_semaphore, #tpu.memory_space<semaphore_mem>>
    tpu.enqueue_dma source(%7 : memref<1024x128xbf16, #tpu.memory_space<any>>) target(%9 : memref<1024x128xbf16, #tpu.memory_space<vmem>>) target_semaphore(%11 : memref<!tpu.dma_semaphore, #tpu.memory_space<semaphore_mem>>)
    %c2_i32 = arith.constant 2 : i32
    %c2_i32_12 = arith.constant 2 : i32
    %c2_i32_13 = arith.constant 2 : i32
    %c0_i32_14 = arith.constant 0 : i32
    %c0_i32_15 = arith.constant 0 : i32
    %12 = tpu.memref_slice %arg7[%c2_i32, %c0_i32_14, %c0_i32_15] : memref<4x1024x128xbf16, #tpu.memory_space<any>> -> memref<1x1024x128xbf16, #tpu.memory_space<any>>
    %13 = tpu.memref_squeeze %12 : memref<1x1024x128xbf16, #tpu.memory_space<any>> -> memref<1024x128xbf16, #tpu.memory_space<any>>
    %c0_i32_16 = arith.constant 0 : i32
    %c0_i32_17 = arith.constant 0 : i32
    %14 = tpu.memref_slice %arg9[%c2_i32_12, %c0_i32_16, %c0_i32_17] : memref<4x1024x128xbf16, #tpu.memory_space<vmem>> -> memref<1x1024x128xbf16, #tpu.memory_space<vmem>>
    %15 = tpu.memref_squeeze %14 : memref<1x1024x128xbf16, #tpu.memory_space<vmem>> -> memref<1024x128xbf16, #tpu.memory_space<vmem>>
    %16 = tpu.memref_slice %arg13[%c2_i32_13] : memref<4x!tpu.dma_semaphore, #tpu.memory_space<semaphore_mem>> -> memref<1x!tpu.dma_semaphore, #tpu.memory_space<semaphore_mem>>
    %17 = tpu.memref_squeeze %16 : memref<1x!tpu.dma_semaphore, #tpu.memory_space<semaphore_mem>> -> memref<!tpu.dma_semaphore, #tpu.memory_space<semaphore_mem>>
    tpu.enqueue_dma source(%13 : memref<1024x128xbf16, #tpu.memory_space<any>>) target(%15 : memref<1024x128xbf16, #tpu.memory_space<vmem>>) target_semaphore(%17 : memref<!tpu.dma_semaphore, #tpu.memory_space<semaphore_mem>>)
    %c3_i32 = arith.constant 3 : i32
    %c3_i32_18 = arith.constant 3 : i32
    %c3_i32_19 = arith.constant 3 : i32
    %c0_i32_20 = arith.constant 0 : i32
    %c0_i32_21 = arith.constant 0 : i32
    %18 = tpu.memref_slice %arg7[%c3_i32, %c0_i32_20, %c0_i32_21] : memref<4x1024x128xbf16, #tpu.memory_space<any>> -> memref<1x1024x128xbf16, #tpu.memory_space<any>>
    %19 = tpu.memref_squeeze %18 : memref<1x1024x128xbf16, #tpu.memory_space<any>> -> memref<1024x128xbf16, #tpu.memory_space<any>>
    %c0_i32_22 = arith.constant 0 : i32
    %c0_i32_23 = arith.constant 0 : i32
    %20 = tpu.memref_slice %arg9[%c3_i32_18, %c0_i32_22, %c0_i32_23] : memref<4x1024x128xbf16, #tpu.memory_space<vmem>> -> memref<1x1024x128xbf16, #tpu.memory_space<vmem>>
    %21 = tpu.memref_squeeze %20 : memref<1x1024x128xbf16, #tpu.memory_space<vmem>> -> memref<1024x128xbf16, #tpu.memory_space<vmem>>
    %22 = tpu.memref_slice %arg13[%c3_i32_19] : memref<4x!tpu.dma_semaphore, #tpu.memory_space<semaphore_mem>> -> memref<1x!tpu.dma_semaphore, #tpu.memory_space<semaphore_mem>>
    %23 = tpu.memref_squeeze %22 : memref<1x!tpu.dma_semaphore, #tpu.memory_space<semaphore_mem>> -> memref<!tpu.dma_semaphore, #tpu.memory_space<semaphore_mem>>
    tpu.enqueue_dma source(%19 : memref<1024x128xbf16, #tpu.memory_space<any>>) target(%21 : memref<1024x128xbf16, #tpu.memory_space<vmem>>) target_semaphore(%23 : memref<!tpu.dma_semaphore, #tpu.memory_space<semaphore_mem>>)
    %c0 = arith.constant 0 : index
    %c0_24 = arith.constant 0 : index
    %24 = vector.load %arg0[%c0, %c0_24] : memref<2x183xf32, #tpu.memory_space<vmem>>, vector<2x183xf32>
    %25 = vector.extract_strided_slice %24 {offsets = [0, 0], sizes = [2, 156], strides = [1, 1]} : vector<2x183xf32> to vector<2x156xf32>
    %c0_25 = arith.constant 0 : index
    %c0_26 = arith.constant 0 : index
    %26 = vector.load %arg10[%c0_25, %c0_26] : memref<18x156xf32, #tpu.memory_space<vmem>>, vector<2x156xf32>
    tpu.vector_store %arg10[%c0_25, %c0_26], %25 {strides = array<i32>} : memref<18x156xf32, #tpu.memory_space<vmem>>, vector<2x156xf32>,
    %27 = vector.extract_strided_slice %24 {offsets = [0, 1], sizes = [2, 156], strides = [1, 1]} : vector<2x183xf32> to vector<2x156xf32>
    %c2 = arith.constant 2 : index
    %c0_27 = arith.constant 0 : index
    %28 = vector.load %arg10[%c2, %c0_27] : memref<18x156xf32, #tpu.memory_space<vmem>>, vector<2x156xf32>
    tpu.vector_store %arg10[%c2, %c0_27], %27 {strides = array<i32>} : memref<18x156xf32, #tpu.memory_space<vmem>>, vector<2x156xf32>,
    %29 = vector.extract_strided_slice %24 {offsets = [0, 2], sizes = [2, 156], strides = [1, 1]} : vector<2x183xf32> to vector<2x156xf32>
    %c4 = arith.constant 4 : index
    %c0_28 = arith.constant 0 : index
    %30 = vector.load %arg10[%c4, %c0_28] : memref<18x156xf32, #tpu.memory_space<vmem>>, vector<2x156xf32>
    tpu.vector_store %arg10[%c4, %c0_28], %29 {strides = array<i32>} : memref<18x156xf32, #tpu.memory_space<vmem>>, vector<2x156xf32>,
    %31 = vector.extract_strided_slice %24 {offsets = [0, 12], sizes = [2, 156], strides = [1, 1]} : vector<2x183xf32> to vector<2x156xf32>
    %c6 = arith.constant 6 : index
    %c0_29 = arith.constant 0 : index
    %32 = vector.load %arg10[%c6, %c0_29] : memref<18x156xf32, #tpu.memory_space<vmem>>, vector<2x156xf32>
    tpu.vector_store %arg10[%c6, %c0_29], %31 {strides = array<i32>} : memref<18x156xf32, #tpu.memory_space<vmem>>, vector<2x156xf32>,
    %33 = vector.extract_strided_slice %24 {offsets = [0, 13], sizes = [2, 156], strides = [1, 1]} : vector<2x183xf32> to vector<2x156xf32>
    %c8 = arith.constant 8 : index
    %c0_30 = arith.constant 0 : index
    %34 = vector.load %arg10[%c8, %c0_30] : memref<18x156xf32, #tpu.memory_space<vmem>>, vector<2x156xf32>
    tpu.vector_store %arg10[%c8, %c0_30], %33 {strides = array<i32>} : memref<18x156xf32, #tpu.memory_space<vmem>>, vector<2x156xf32>,
    %35 = vector.extract_strided_slice %24 {offsets = [0, 14], sizes = [2, 156], strides = [1, 1]} : vector<2x183xf32> to vector<2x156xf32>
    %c10 = arith.constant 10 : index
    %c0_31 = arith.constant 0 : index
    %36 = vector.load %arg10[%c10, %c0_31] : memref<18x156xf32, #tpu.memory_space<vmem>>, vector<2x156xf32>
    tpu.vector_store %arg10[%c10, %c0_31], %35 {strides = array<i32>} : memref<18x156xf32, #tpu.memory_space<vmem>>, vector<2x156xf32>,
    %37 = vector.extract_strided_slice %24 {offsets = [0, 24], sizes = [2, 156], strides = [1, 1]} : vector<2x183xf32> to vector<2x156xf32>
    %c12 = arith.constant 12 : index
    %c0_32 = arith.constant 0 : index
    %38 = vector.load %arg10[%c12, %c0_32] : memref<18x156xf32, #tpu.memory_space<vmem>>, vector<2x156xf32>
    tpu.vector_store %arg10[%c12, %c0_32], %37 {strides = array<i32>} : memref<18x156xf32, #tpu.memory_space<vmem>>, vector<2x156xf32>,
    %39 = vector.extract_strided_slice %24 {offsets = [0, 25], sizes = [2, 156], strides = [1, 1]} : vector<2x183xf32> to vector<2x156xf32>
    %c14 = arith.constant 14 : index
    %c0_33 = arith.constant 0 : index
    %40 = vector.load %arg10[%c14, %c0_33] : memref<18x156xf32, #tpu.memory_space<vmem>>, vector<2x156xf32>
    tpu.vector_store %arg10[%c14, %c0_33], %39 {strides = array<i32>} : memref<18x156xf32, #tpu.memory_space<vmem>>, vector<2x156xf32>,
    %41 = vector.extract_strided_slice %24 {offsets = [0, 26], sizes = [2, 156], strides = [1, 1]} : vector<2x183xf32> to vector<2x156xf32>
    %c16 = arith.constant 16 : index
    %c0_34 = arith.constant 0 : index
    %42 = vector.load %arg10[%c16, %c0_34] : memref<18x156xf32, #tpu.memory_space<vmem>>, vector<2x156xf32>
    tpu.vector_store %arg10[%c16, %c0_34], %41 {strides = array<i32>} : memref<18x156xf32, #tpu.memory_space<vmem>>, vector<2x156xf32>,
    %c0_35 = arith.constant 0 : index
    %c0_36 = arith.constant 0 : index
    %43 = vector.load %arg2[%c0_35, %c0_36] : memref<32x18xbf16, #tpu.memory_space<vmem>>, vector<32x18xbf16>
    %c0_37 = arith.constant 0 : index
    %c0_38 = arith.constant 0 : index
    %44 = vector.load %arg10[%c0_37, %c0_38] : memref<18x156xf32, #tpu.memory_space<vmem>>, vector<18x156xf32>
    %45 = arith.truncf %44 : vector<18x156xf32> to vector<18x156xbf16>
    %cst = arith.constant dense<0.000000e+00> : vector<32x156xf32>
    %46 = tpu.matmul %43, %45, %cst {dimension_numbers = #tpu.dot_dimension_numbers<[1], [0], [0], [1], [0, 0, 1, 1], [], []>} : vector<32x18xbf16>, vector<18x156xbf16>, vector<32x156xf32> -> vector<32x156xf32>
    %c0_39 = arith.constant 0 : index
    %c0_40 = arith.constant 0 : index
    %47 = vector.load %arg3[%c0_39, %c0_40] : memref<32x1xf32, #tpu.memory_space<vmem>>, vector<32x1xf32>
    %48 = vector.broadcast %47 : vector<32x1xf32> to vector<32x156xf32>
    %49 = arith.addf %46, %48 : vector<32x156xf32>
    %cst_41 = arith.constant 0.000000e+00 : f32
    %50 = vector.broadcast %cst_41 : f32 to vector<32x156xf32>
    %51 = arith.maximumf %49, %50 : vector<32x156xf32>
    %c0_42 = arith.constant 0 : index
    %c0_43 = arith.constant 0 : index
    %52 = vector.load %arg1[%c0_42, %c0_43] : memref<1x156xf32, #tpu.memory_space<vmem>>, vector<1x156xf32>
    %53 = vector.broadcast %52 : vector<1x156xf32> to vector<32x156xf32>
    %54 = arith.mulf %51, %53 : vector<32x156xf32>
    %55 = arith.truncf %54 : vector<32x156xf32> to vector<32x156xbf16>
    %56 = vector.extract_strided_slice %55 {offsets = [0, 0], sizes = [32, 128], strides = [1, 1]} : vector<32x156xbf16> to vector<32x128xbf16>
    %c0_44 = arith.constant 0 : index
    %c0_45 = arith.constant 0 : index
    %57 = vector.load %arg11[%c0_44, %c0_45] : memref<288x128xbf16, #tpu.memory_space<vmem>>, vector<32x128xbf16>
    tpu.vector_store %arg11[%c0_44, %c0_45], %56 {strides = array<i32>} : memref<288x128xbf16, #tpu.memory_space<vmem>>, vector<32x128xbf16>,
    %58 = vector.extract_strided_slice %55 {offsets = [0, 1], sizes = [32, 128], strides = [1, 1]} : vector<32x156xbf16> to vector<32x128xbf16>
    %c32 = arith.constant 32 : index
    %c0_46 = arith.constant 0 : index
    %59 = vector.load %arg11[%c32, %c0_46] : memref<288x128xbf16, #tpu.memory_space<vmem>>, vector<32x128xbf16>
    tpu.vector_store %arg11[%c32, %c0_46], %58 {strides = array<i32>} : memref<288x128xbf16, #tpu.memory_space<vmem>>, vector<32x128xbf16>,
    %60 = vector.extract_strided_slice %55 {offsets = [0, 2], sizes = [32, 128], strides = [1, 1]} : vector<32x156xbf16> to vector<32x128xbf16>
    %c64 = arith.constant 64 : index
    %c0_47 = arith.constant 0 : index
    %61 = vector.load %arg11[%c64, %c0_47] : memref<288x128xbf16, #tpu.memory_space<vmem>>, vector<32x128xbf16>
    tpu.vector_store %arg11[%c64, %c0_47], %60 {strides = array<i32>} : memref<288x128xbf16, #tpu.memory_space<vmem>>, vector<32x128xbf16>,
    %62 = vector.extract_strided_slice %55 {offsets = [0, 12], sizes = [32, 128], strides = [1, 1]} : vector<32x156xbf16> to vector<32x128xbf16>
    %c96 = arith.constant 96 : index
    %c0_48 = arith.constant 0 : index
    %63 = vector.load %arg11[%c96, %c0_48] : memref<288x128xbf16, #tpu.memory_space<vmem>>, vector<32x128xbf16>
    tpu.vector_store %arg11[%c96, %c0_48], %62 {strides = array<i32>} : memref<288x128xbf16, #tpu.memory_space<vmem>>, vector<32x128xbf16>,
    %64 = vector.extract_strided_slice %55 {offsets = [0, 13], sizes = [32, 128], strides = [1, 1]} : vector<32x156xbf16> to vector<32x128xbf16>
    %c128 = arith.constant 128 : index
    %c0_49 = arith.constant 0 : index
    %65 = vector.load %arg11[%c128, %c0_49] : memref<288x128xbf16, #tpu.memory_space<vmem>>, vector<32x128xbf16>
    tpu.vector_store %arg11[%c128, %c0_49], %64 {strides = array<i32>} : memref<288x128xbf16, #tpu.memory_space<vmem>>, vector<32x128xbf16>,
    %66 = vector.extract_strided_slice %55 {offsets = [0, 14], sizes = [32, 128], strides = [1, 1]} : vector<32x156xbf16> to vector<32x128xbf16>
    %c160 = arith.constant 160 : index
    %c0_50 = arith.constant 0 : index
    %67 = vector.load %arg11[%c160, %c0_50] : memref<288x128xbf16, #tpu.memory_space<vmem>>, vector<32x128xbf16>
    tpu.vector_store %arg11[%c160, %c0_50], %66 {strides = array<i32>} : memref<288x128xbf16, #tpu.memory_space<vmem>>, vector<32x128xbf16>,
    %68 = vector.extract_strided_slice %55 {offsets = [0, 24], sizes = [32, 128], strides = [1, 1]} : vector<32x156xbf16> to vector<32x128xbf16>
    %c192 = arith.constant 192 : index
    %c0_51 = arith.constant 0 : index
    %69 = vector.load %arg11[%c192, %c0_51] : memref<288x128xbf16, #tpu.memory_space<vmem>>, vector<32x128xbf16>
    tpu.vector_store %arg11[%c192, %c0_51], %68 {strides = array<i32>} : memref<288x128xbf16, #tpu.memory_space<vmem>>, vector<32x128xbf16>,
    %70 = vector.extract_strided_slice %55 {offsets = [0, 25], sizes = [32, 128], strides = [1, 1]} : vector<32x156xbf16> to vector<32x128xbf16>
    %c224 = arith.constant 224 : index
    %c0_52 = arith.constant 0 : index
    %71 = vector.load %arg11[%c224, %c0_52] : memref<288x128xbf16, #tpu.memory_space<vmem>>, vector<32x128xbf16>
    tpu.vector_store %arg11[%c224, %c0_52], %70 {strides = array<i32>} : memref<288x128xbf16, #tpu.memory_space<vmem>>, vector<32x128xbf16>,
    %72 = vector.extract_strided_slice %55 {offsets = [0, 26], sizes = [32, 128], strides = [1, 1]} : vector<32x156xbf16> to vector<32x128xbf16>
    %c256 = arith.constant 256 : index
    %c0_53 = arith.constant 0 : index
    %73 = vector.load %arg11[%c256, %c0_53] : memref<288x128xbf16, #tpu.memory_space<vmem>>, vector<32x128xbf16>
    tpu.vector_store %arg11[%c256, %c0_53], %72 {strides = array<i32>} : memref<288x128xbf16, #tpu.memory_space<vmem>>, vector<32x128xbf16>,
    %c0_54 = arith.constant 0 : index
    %c0_55 = arith.constant 0 : index
    %74 = vector.load %arg4[%c0_54, %c0_55] : memref<64x288xbf16, #tpu.memory_space<vmem>>, vector<64x288xbf16>
    %c0_56 = arith.constant 0 : index
    %c0_57 = arith.constant 0 : index
    %75 = vector.load %arg11[%c0_56, %c0_57] : memref<288x128xbf16, #tpu.memory_space<vmem>>, vector<288x128xbf16>
    %cst_58 = arith.constant dense<0.000000e+00> : vector<64x128xf32>
    %76 = tpu.matmul %74, %75, %cst_58 {dimension_numbers = #tpu.dot_dimension_numbers<[1], [0], [0], [1], [0, 0, 1, 1], [], []>} : vector<64x288xbf16>, vector<288x128xbf16>, vector<64x128xf32> -> vector<64x128xf32>
    %c0_59 = arith.constant 0 : index
    %c0_60 = arith.constant 0 : index
    %77 = vector.load %arg5[%c0_59, %c0_60] : memref<64x1xf32, #tpu.memory_space<vmem>>, vector<64x1xf32>
    %78 = vector.broadcast %77 : vector<64x1xf32> to vector<64x128xf32>
    %79 = arith.addf %76, %78 : vector<64x128xf32>
    %cst_61 = arith.constant 0.000000e+00 : f32
    %80 = vector.broadcast %cst_61 : f32 to vector<64x128xf32>
    %81 = arith.maximumf %79, %80 : vector<64x128xf32>
    %82 = vector.extract_strided_slice %81 {offsets = [0, 0], sizes = [2, 128], strides = [1, 1]} : vector<64x128xf32> to vector<2x128xf32>
    %c0_62 = arith.constant 0 : index
    %c0_63 = arith.constant 0 : index
    %83 = vector.load %arg12[%c0_62, %c0_63] : memref<2x4096xf32, #tpu.memory_space<vmem>>, vector<2x128xf32>
    tpu.vector_store %arg12[%c0_62, %c0_63], %82 {strides = array<i32>} : memref<2x4096xf32, #tpu.memory_space<vmem>>, vector<2x128xf32>,
    %84 = vector.extract_strided_slice %81 {offsets = [2, 0], sizes = [2, 128], strides = [1, 1]} : vector<64x128xf32> to vector<2x128xf32>
    %c0_64 = arith.constant 0 : index
    %c128_65 = arith.constant 128 : index
    %85 = vector.load %arg12[%c0_64, %c128_65] : memref<2x4096xf32, #tpu.memory_space<vmem>>, vector<2x128xf32>
    tpu.vector_store %arg12[%c0_64, %c128_65], %84 {strides = array<i32>} : memref<2x4096xf32, #tpu.memory_space<vmem>>, vector<2x128xf32>,
    %86 = vector.extract_strided_slice %81 {offsets = [4, 0], sizes = [2, 128], strides = [1, 1]} : vector<64x128xf32> to vector<2x128xf32>
    %c0_66 = arith.constant 0 : index
    %c256_67 = arith.constant 256 : index
    %87 = vector.load %arg12[%c0_66, %c256_67] : memref<2x4096xf32, #tpu.memory_space<vmem>>, vector<2x128xf32>
    tpu.vector_store %arg12[%c0_66, %c256_67], %86 {strides = array<i32>} : memref<2x4096xf32, #tpu.memory_space<vmem>>, vector<2x128xf32>,
    %88 = vector.extract_strided_slice %81 {offsets = [6, 0], sizes = [2, 128], strides = [1, 1]} : vector<64x128xf32> to vector<2x128xf32>
    %c0_68 = arith.constant 0 : index
    %c384 = arith.constant 384 : index
    %89 = vector.load %arg12[%c0_68, %c384] : memref<2x4096xf32, #tpu.memory_space<vmem>>, vector<2x128xf32>
    tpu.vector_store %arg12[%c0_68, %c384], %88 {strides = array<i32>} : memref<2x4096xf32, #tpu.memory_space<vmem>>, vector<2x128xf32>,
    %90 = vector.extract_strided_slice %81 {offsets = [8, 0], sizes = [2, 128], strides = [1, 1]} : vector<64x128xf32> to vector<2x128xf32>
    %c0_69 = arith.constant 0 : index
    %c512 = arith.constant 512 : index
    %91 = vector.load %arg12[%c0_69, %c512] : memref<2x4096xf32, #tpu.memory_space<vmem>>, vector<2x128xf32>
    tpu.vector_store %arg12[%c0_69, %c512], %90 {strides = array<i32>} : memref<2x4096xf32, #tpu.memory_space<vmem>>, vector<2x128xf32>,
    %92 = vector.extract_strided_slice %81 {offsets = [10, 0], sizes = [2, 128], strides = [1, 1]} : vector<64x128xf32> to vector<2x128xf32>
    %c0_70 = arith.constant 0 : index
    %c640 = arith.constant 640 : index
    %93 = vector.load %arg12[%c0_70, %c640] : memref<2x4096xf32, #tpu.memory_space<vmem>>, vector<2x128xf32>
    tpu.vector_store %arg12[%c0_70, %c640], %92 {strides = array<i32>} : memref<2x4096xf32, #tpu.memory_space<vmem>>, vector<2x128xf32>,
    %94 = vector.extract_strided_slice %81 {offsets = [12, 0], sizes = [2, 128], strides = [1, 1]} : vector<64x128xf32> to vector<2x128xf32>
    %c0_71 = arith.constant 0 : index
    %c768 = arith.constant 768 : index
    %95 = vector.load %arg12[%c0_71, %c768] : memref<2x4096xf32, #tpu.memory_space<vmem>>, vector<2x128xf32>
    tpu.vector_store %arg12[%c0_71, %c768], %94 {strides = array<i32>} : memref<2x4096xf32, #tpu.memory_space<vmem>>, vector<2x128xf32>,
    %96 = vector.extract_strided_slice %81 {offsets = [14, 0], sizes = [2, 128], strides = [1, 1]} : vector<64x128xf32> to vector<2x128xf32>
    %c0_72 = arith.constant 0 : index
    %c896 = arith.constant 896 : index
    %97 = vector.load %arg12[%c0_72, %c896] : memref<2x4096xf32, #tpu.memory_space<vmem>>, vector<2x128xf32>
    tpu.vector_store %arg12[%c0_72, %c896], %96 {strides = array<i32>} : memref<2x4096xf32, #tpu.memory_space<vmem>>, vector<2x128xf32>,
    %98 = vector.extract_strided_slice %81 {offsets = [16, 0], sizes = [2, 128], strides = [1, 1]} : vector<64x128xf32> to vector<2x128xf32>
    %c0_73 = arith.constant 0 : index
    %c1024 = arith.constant 1024 : index
    %99 = vector.load %arg12[%c0_73, %c1024] : memref<2x4096xf32, #tpu.memory_space<vmem>>, vector<2x128xf32>
    tpu.vector_store %arg12[%c0_73, %c1024], %98 {strides = array<i32>} : memref<2x4096xf32, #tpu.memory_space<vmem>>, vector<2x128xf32>,
    %100 = vector.extract_strided_slice %81 {offsets = [18, 0], sizes = [2, 128], strides = [1, 1]} : vector<64x128xf32> to vector<2x128xf32>
    %c0_74 = arith.constant 0 : index
    %c1152 = arith.constant 1152 : index
    %101 = vector.load %arg12[%c0_74, %c1152] : memref<2x4096xf32, #tpu.memory_space<vmem>>, vector<2x128xf32>
    tpu.vector_store %arg12[%c0_74, %c1152], %100 {strides = array<i32>} : memref<2x4096xf32, #tpu.memory_space<vmem>>, vector<2x128xf32>,
    %102 = vector.extract_strided_slice %81 {offsets = [20, 0], sizes = [2, 128], strides = [1, 1]} : vector<64x128xf32> to vector<2x128xf32>
    %c0_75 = arith.constant 0 : index
    %c1280 = arith.constant 1280 : index
    %103 = vector.load %arg12[%c0_75, %c1280] : memref<2x4096xf32, #tpu.memory_space<vmem>>, vector<2x128xf32>
    tpu.vector_store %arg12[%c0_75, %c1280], %102 {strides = array<i32>} : memref<2x4096xf32, #tpu.memory_space<vmem>>, vector<2x128xf32>,
    %104 = vector.extract_strided_slice %81 {offsets = [22, 0], sizes = [2, 128], strides = [1, 1]} : vector<64x128xf32> to vector<2x128xf32>
    %c0_76 = arith.constant 0 : index
    %c1408 = arith.constant 1408 : index
    %105 = vector.load %arg12[%c0_76, %c1408] : memref<2x4096xf32, #tpu.memory_space<vmem>>, vector<2x128xf32>
    tpu.vector_store %arg12[%c0_76, %c1408], %104 {strides = array<i32>} : memref<2x4096xf32, #tpu.memory_space<vmem>>, vector<2x128xf32>,
    %106 = vector.extract_strided_slice %81 {offsets = [24, 0], sizes = [2, 128], strides = [1, 1]} : vector<64x128xf32> to vector<2x128xf32>
    %c0_77 = arith.constant 0 : index
    %c1536 = arith.constant 1536 : index
    %107 = vector.load %arg12[%c0_77, %c1536] : memref<2x4096xf32, #tpu.memory_space<vmem>>, vector<2x128xf32>
    tpu.vector_store %arg12[%c0_77, %c1536], %106 {strides = array<i32>} : memref<2x4096xf32, #tpu.memory_space<vmem>>, vector<2x128xf32>,
    %108 = vector.extract_strided_slice %81 {offsets = [26, 0], sizes = [2, 128], strides = [1, 1]} : vector<64x128xf32> to vector<2x128xf32>
    %c0_78 = arith.constant 0 : index
    %c1664 = arith.constant 1664 : index
    %109 = vector.load %arg12[%c0_78, %c1664] : memref<2x4096xf32, #tpu.memory_space<vmem>>, vector<2x128xf32>
    tpu.vector_store %arg12[%c0_78, %c1664], %108 {strides = array<i32>} : memref<2x4096xf32, #tpu.memory_space<vmem>>, vector<2x128xf32>,
    %110 = vector.extract_strided_slice %81 {offsets = [28, 0], sizes = [2, 128], strides = [1, 1]} : vector<64x128xf32> to vector<2x128xf32>
    %c0_79 = arith.constant 0 : index
    %c1792 = arith.constant 1792 : index
    %111 = vector.load %arg12[%c0_79, %c1792] : memref<2x4096xf32, #tpu.memory_space<vmem>>, vector<2x128xf32>
    tpu.vector_store %arg12[%c0_79, %c1792], %110 {strides = array<i32>} : memref<2x4096xf32, #tpu.memory_space<vmem>>, vector<2x128xf32>,
    %112 = vector.extract_strided_slice %81 {offsets = [30, 0], sizes = [2, 128], strides = [1, 1]} : vector<64x128xf32> to vector<2x128xf32>
    %c0_80 = arith.constant 0 : index
    %c1920 = arith.constant 1920 : index
    %113 = vector.load %arg12[%c0_80, %c1920] : memref<2x4096xf32, #tpu.memory_space<vmem>>, vector<2x128xf32>
    tpu.vector_store %arg12[%c0_80, %c1920], %112 {strides = array<i32>} : memref<2x4096xf32, #tpu.memory_space<vmem>>, vector<2x128xf32>,
    %114 = vector.extract_strided_slice %81 {offsets = [32, 0], sizes = [2, 128], strides = [1, 1]} : vector<64x128xf32> to vector<2x128xf32>
    %c0_81 = arith.constant 0 : index
    %c2048 = arith.constant 2048 : index
    %115 = vector.load %arg12[%c0_81, %c2048] : memref<2x4096xf32, #tpu.memory_space<vmem>>, vector<2x128xf32>
    tpu.vector_store %arg12[%c0_81, %c2048], %114 {strides = array<i32>} : memref<2x4096xf32, #tpu.memory_space<vmem>>, vector<2x128xf32>,
    %116 = vector.extract_strided_slice %81 {offsets = [34, 0], sizes = [2, 128], strides = [1, 1]} : vector<64x128xf32> to vector<2x128xf32>
    %c0_82 = arith.constant 0 : index
    %c2176 = arith.constant 2176 : index
    %117 = vector.load %arg12[%c0_82, %c2176] : memref<2x4096xf32, #tpu.memory_space<vmem>>, vector<2x128xf32>
    tpu.vector_store %arg12[%c0_82, %c2176], %116 {strides = array<i32>} : memref<2x4096xf32, #tpu.memory_space<vmem>>, vector<2x128xf32>,
    %118 = vector.extract_strided_slice %81 {offsets = [36, 0], sizes = [2, 128], strides = [1, 1]} : vector<64x128xf32> to vector<2x128xf32>
    %c0_83 = arith.constant 0 : index
    %c2304 = arith.constant 2304 : index
    %119 = vector.load %arg12[%c0_83, %c2304] : memref<2x4096xf32, #tpu.memory_space<vmem>>, vector<2x128xf32>
    tpu.vector_store %arg12[%c0_83, %c2304], %118 {strides = array<i32>} : memref<2x4096xf32, #tpu.memory_space<vmem>>, vector<2x128xf32>,
    %120 = vector.extract_strided_slice %81 {offsets = [38, 0], sizes = [2, 128], strides = [1, 1]} : vector<64x128xf32> to vector<2x128xf32>
    %c0_84 = arith.constant 0 : index
    %c2432 = arith.constant 2432 : index
    %121 = vector.load %arg12[%c0_84, %c2432] : memref<2x4096xf32, #tpu.memory_space<vmem>>, vector<2x128xf32>
    tpu.vector_store %arg12[%c0_84, %c2432], %120 {strides = array<i32>} : memref<2x4096xf32, #tpu.memory_space<vmem>>, vector<2x128xf32>,
    %122 = vector.extract_strided_slice %81 {offsets = [40, 0], sizes = [2, 128], strides = [1, 1]} : vector<64x128xf32> to vector<2x128xf32>
    %c0_85 = arith.constant 0 : index
    %c2560 = arith.constant 2560 : index
    %123 = vector.load %arg12[%c0_85, %c2560] : memref<2x4096xf32, #tpu.memory_space<vmem>>, vector<2x128xf32>
    tpu.vector_store %arg12[%c0_85, %c2560], %122 {strides = array<i32>} : memref<2x4096xf32, #tpu.memory_space<vmem>>, vector<2x128xf32>,
    %124 = vector.extract_strided_slice %81 {offsets = [42, 0], sizes = [2, 128], strides = [1, 1]} : vector<64x128xf32> to vector<2x128xf32>
    %c0_86 = arith.constant 0 : index
    %c2688 = arith.constant 2688 : index
    %125 = vector.load %arg12[%c0_86, %c2688] : memref<2x4096xf32, #tpu.memory_space<vmem>>, vector<2x128xf32>
    tpu.vector_store %arg12[%c0_86, %c2688], %124 {strides = array<i32>} : memref<2x4096xf32, #tpu.memory_space<vmem>>, vector<2x128xf32>,
    %126 = vector.extract_strided_slice %81 {offsets = [44, 0], sizes = [2, 128], strides = [1, 1]} : vector<64x128xf32> to vector<2x128xf32>
    %c0_87 = arith.constant 0 : index
    %c2816 = arith.constant 2816 : index
    %127 = vector.load %arg12[%c0_87, %c2816] : memref<2x4096xf32, #tpu.memory_space<vmem>>, vector<2x128xf32>
    tpu.vector_store %arg12[%c0_87, %c2816], %126 {strides = array<i32>} : memref<2x4096xf32, #tpu.memory_space<vmem>>, vector<2x128xf32>,
    %128 = vector.extract_strided_slice %81 {offsets = [46, 0], sizes = [2, 128], strides = [1, 1]} : vector<64x128xf32> to vector<2x128xf32>
    %c0_88 = arith.constant 0 : index
    %c2944 = arith.constant 2944 : index
    %129 = vector.load %arg12[%c0_88, %c2944] : memref<2x4096xf32, #tpu.memory_space<vmem>>, vector<2x128xf32>
    tpu.vector_store %arg12[%c0_88, %c2944], %128 {strides = array<i32>} : memref<2x4096xf32, #tpu.memory_space<vmem>>, vector<2x128xf32>,
    %130 = vector.extract_strided_slice %81 {offsets = [48, 0], sizes = [2, 128], strides = [1, 1]} : vector<64x128xf32> to vector<2x128xf32>
    %c0_89 = arith.constant 0 : index
    %c3072 = arith.constant 3072 : index
    %131 = vector.load %arg12[%c0_89, %c3072] : memref<2x4096xf32, #tpu.memory_space<vmem>>, vector<2x128xf32>
    tpu.vector_store %arg12[%c0_89, %c3072], %130 {strides = array<i32>} : memref<2x4096xf32, #tpu.memory_space<vmem>>, vector<2x128xf32>,
    %132 = vector.extract_strided_slice %81 {offsets = [50, 0], sizes = [2, 128], strides = [1, 1]} : vector<64x128xf32> to vector<2x128xf32>
    %c0_90 = arith.constant 0 : index
    %c3200 = arith.constant 3200 : index
    %133 = vector.load %arg12[%c0_90, %c3200] : memref<2x4096xf32, #tpu.memory_space<vmem>>, vector<2x128xf32>
    tpu.vector_store %arg12[%c0_90, %c3200], %132 {strides = array<i32>} : memref<2x4096xf32, #tpu.memory_space<vmem>>, vector<2x128xf32>,
    %134 = vector.extract_strided_slice %81 {offsets = [52, 0], sizes = [2, 128], strides = [1, 1]} : vector<64x128xf32> to vector<2x128xf32>
    %c0_91 = arith.constant 0 : index
    %c3328 = arith.constant 3328 : index
    %135 = vector.load %arg12[%c0_91, %c3328] : memref<2x4096xf32, #tpu.memory_space<vmem>>, vector<2x128xf32>
    tpu.vector_store %arg12[%c0_91, %c3328], %134 {strides = array<i32>} : memref<2x4096xf32, #tpu.memory_space<vmem>>, vector<2x128xf32>,
    %136 = vector.extract_strided_slice %81 {offsets = [54, 0], sizes = [2, 128], strides = [1, 1]} : vector<64x128xf32> to vector<2x128xf32>
    %c0_92 = arith.constant 0 : index
    %c3456 = arith.constant 3456 : index
    %137 = vector.load %arg12[%c0_92, %c3456] : memref<2x4096xf32, #tpu.memory_space<vmem>>, vector<2x128xf32>
    tpu.vector_store %arg12[%c0_92, %c3456], %136 {strides = array<i32>} : memref<2x4096xf32, #tpu.memory_space<vmem>>, vector<2x128xf32>,
    %138 = vector.extract_strided_slice %81 {offsets = [56, 0], sizes = [2, 128], strides = [1, 1]} : vector<64x128xf32> to vector<2x128xf32>
    %c0_93 = arith.constant 0 : index
    %c3584 = arith.constant 3584 : index
    %139 = vector.load %arg12[%c0_93, %c3584] : memref<2x4096xf32, #tpu.memory_space<vmem>>, vector<2x128xf32>
    tpu.vector_store %arg12[%c0_93, %c3584], %138 {strides = array<i32>} : memref<2x4096xf32, #tpu.memory_space<vmem>>, vector<2x128xf32>,
    %140 = vector.extract_strided_slice %81 {offsets = [58, 0], sizes = [2, 128], strides = [1, 1]} : vector<64x128xf32> to vector<2x128xf32>
    %c0_94 = arith.constant 0 : index
    %c3712 = arith.constant 3712 : index
    %141 = vector.load %arg12[%c0_94, %c3712] : memref<2x4096xf32, #tpu.memory_space<vmem>>, vector<2x128xf32>
    tpu.vector_store %arg12[%c0_94, %c3712], %140 {strides = array<i32>} : memref<2x4096xf32, #tpu.memory_space<vmem>>, vector<2x128xf32>,
    %142 = vector.extract_strided_slice %81 {offsets = [60, 0], sizes = [2, 128], strides = [1, 1]} : vector<64x128xf32> to vector<2x128xf32>
    %c0_95 = arith.constant 0 : index
    %c3840 = arith.constant 3840 : index
    %143 = vector.load %arg12[%c0_95, %c3840] : memref<2x4096xf32, #tpu.memory_space<vmem>>, vector<2x128xf32>
    tpu.vector_store %arg12[%c0_95, %c3840], %142 {strides = array<i32>} : memref<2x4096xf32, #tpu.memory_space<vmem>>, vector<2x128xf32>,
    %144 = vector.extract_strided_slice %81 {offsets = [62, 0], sizes = [2, 128], strides = [1, 1]} : vector<64x128xf32> to vector<2x128xf32>
    %c0_96 = arith.constant 0 : index
    %c3968 = arith.constant 3968 : index
    %145 = vector.load %arg12[%c0_96, %c3968] : memref<2x4096xf32, #tpu.memory_space<vmem>>, vector<2x128xf32>
    tpu.vector_store %arg12[%c0_96, %c3968], %144 {strides = array<i32>} : memref<2x4096xf32, #tpu.memory_space<vmem>>, vector<2x128xf32>,
    %c0_97 = arith.constant 0 : index
    %c0_98 = arith.constant 0 : index
    %146 = vector.load %arg6[%c0_97, %c0_98] : memref<1x128xf32, #tpu.memory_space<vmem>>, vector<1x128xf32>
    %c0_i32_99 = arith.constant 0 : i32
    %c0_i32_100 = arith.constant 0 : i32
    %c0_i32_101 = arith.constant 0 : i32
    %c0_i32_102 = arith.constant 0 : i32
    %c0_i32_103 = arith.constant 0 : i32
    %147 = tpu.memref_slice %arg7[%c0_i32_99, %c0_i32_102, %c0_i32_103] : memref<4x1024x128xbf16, #tpu.memory_space<any>> -> memref<1x1024x128xbf16, #tpu.memory_space<any>>
    %148 = tpu.memref_squeeze %147 : memref<1x1024x128xbf16, #tpu.memory_space<any>> -> memref<1024x128xbf16, #tpu.memory_space<any>>
    %c0_i32_104 = arith.constant 0 : i32
    %c0_i32_105 = arith.constant 0 : i32
    %149 = tpu.memref_slice %arg9[%c0_i32_100, %c0_i32_104, %c0_i32_105] : memref<4x1024x128xbf16, #tpu.memory_space<vmem>> -> memref<1x1024x128xbf16, #tpu.memory_space<vmem>>
    %150 = tpu.memref_squeeze %149 : memref<1x1024x128xbf16, #tpu.memory_space<vmem>> -> memref<1024x128xbf16, #tpu.memory_space<vmem>>
    %151 = tpu.memref_slice %arg13[%c0_i32_101] : memref<4x!tpu.dma_semaphore, #tpu.memory_space<semaphore_mem>> -> memref<1x!tpu.dma_semaphore, #tpu.memory_space<semaphore_mem>>
    %152 = tpu.memref_squeeze %151 : memref<1x!tpu.dma_semaphore, #tpu.memory_space<semaphore_mem>> -> memref<!tpu.dma_semaphore, #tpu.memory_space<semaphore_mem>>
    tpu.wait_dma2 semaphore(%152 : memref<!tpu.dma_semaphore, #tpu.memory_space<semaphore_mem>>) src(%148 : memref<1024x128xbf16, #tpu.memory_space<any>>) dst(%150 : memref<1024x128xbf16, #tpu.memory_space<vmem>>)
    %c0_106 = arith.constant 0 : index
    %c0_107 = arith.constant 0 : index
    %153 = vector.load %arg12[%c0_106, %c0_107] : memref<2x4096xf32, #tpu.memory_space<vmem>>, vector<2x1024xf32>
    %154 = arith.truncf %153 : vector<2x1024xf32> to vector<2x1024xbf16>
    %c0_108 = arith.constant 0 : index
    %c0_109 = arith.constant 0 : index
    %c0_110 = arith.constant 0 : index
    %155 = vector.load %arg9[%c0_108, %c0_109, %c0_110] : memref<4x1024x128xbf16, #tpu.memory_space<vmem>>, vector<1x1024x128xbf16>
    %156 = vector.shape_cast %155 : vector<1x1024x128xbf16> to vector<1024x128xbf16>
    %cst_111 = arith.constant dense<0.000000e+00> : vector<2x128xf32>
    %157 = tpu.matmul %154, %156, %cst_111 {dimension_numbers = #tpu.dot_dimension_numbers<[1], [0], [0], [1], [0, 0, 1, 1], [], []>} : vector<2x1024xbf16>, vector<1024x128xbf16>, vector<2x128xf32> -> vector<2x128xf32>
    %158 = vector.broadcast %146 : vector<1x128xf32> to vector<2x128xf32>
    %159 = arith.addf %158, %157 : vector<2x128xf32>
    %c1_i32_112 = arith.constant 1 : i32
    %c1_i32_113 = arith.constant 1 : i32
    %c1_i32_114 = arith.constant 1 : i32
    %c0_i32_115 = arith.constant 0 : i32
    %c0_i32_116 = arith.constant 0 : i32
    %160 = tpu.memref_slice %arg7[%c1_i32_112, %c0_i32_115, %c0_i32_116] : memref<4x1024x128xbf16, #tpu.memory_space<any>> -> memref<1x1024x128xbf16, #tpu.memory_space<any>>
    %161 = tpu.memref_squeeze %160 : memref<1x1024x128xbf16, #tpu.memory_space<any>> -> memref<1024x128xbf16, #tpu.memory_space<any>>
    %c0_i32_117 = arith.constant 0 : i32
    %c0_i32_118 = arith.constant 0 : i32
    %162 = tpu.memref_slice %arg9[%c1_i32_113, %c0_i32_117, %c0_i32_118] : memref<4x1024x128xbf16, #tpu.memory_space<vmem>> -> memref<1x1024x128xbf16, #tpu.memory_space<vmem>>
    %163 = tpu.memref_squeeze %162 : memref<1x1024x128xbf16, #tpu.memory_space<vmem>> -> memref<1024x128xbf16, #tpu.memory_space<vmem>>
    %164 = tpu.memref_slice %arg13[%c1_i32_114] : memref<4x!tpu.dma_semaphore, #tpu.memory_space<semaphore_mem>> -> memref<1x!tpu.dma_semaphore, #tpu.memory_space<semaphore_mem>>
    %165 = tpu.memref_squeeze %164 : memref<1x!tpu.dma_semaphore, #tpu.memory_space<semaphore_mem>> -> memref<!tpu.dma_semaphore, #tpu.memory_space<semaphore_mem>>
    tpu.wait_dma2 semaphore(%165 : memref<!tpu.dma_semaphore, #tpu.memory_space<semaphore_mem>>) src(%161 : memref<1024x128xbf16, #tpu.memory_space<any>>) dst(%163 : memref<1024x128xbf16, #tpu.memory_space<vmem>>)
    %c0_119 = arith.constant 0 : index
    %c1024_120 = arith.constant 1024 : index
    %166 = vector.load %arg12[%c0_119, %c1024_120] : memref<2x4096xf32, #tpu.memory_space<vmem>>, vector<2x1024xf32>
    %167 = arith.truncf %166 : vector<2x1024xf32> to vector<2x1024xbf16>
    %c1 = arith.constant 1 : index
    %c0_121 = arith.constant 0 : index
    %c0_122 = arith.constant 0 : index
    %168 = vector.load %arg9[%c1, %c0_121, %c0_122] : memref<4x1024x128xbf16, #tpu.memory_space<vmem>>, vector<1x1024x128xbf16>
    %169 = vector.shape_cast %168 : vector<1x1024x128xbf16> to vector<1024x128xbf16>
    %cst_123 = arith.constant dense<0.000000e+00> : vector<2x128xf32>
    %170 = tpu.matmul %167, %169, %cst_123 {dimension_numbers = #tpu.dot_dimension_numbers<[1], [0], [0], [1], [0, 0, 1, 1], [], []>} : vector<2x1024xbf16>, vector<1024x128xbf16>, vector<2x128xf32> -> vector<2x128xf32>
    %171 = arith.addf %159, %170 : vector<2x128xf32>
    %c2_i32_124 = arith.constant 2 : i32
    %c2_i32_125 = arith.constant 2 : i32
    %c2_i32_126 = arith.constant 2 : i32
    %c0_i32_127 = arith.constant 0 : i32
    %c0_i32_128 = arith.constant 0 : i32
    %172 = tpu.memref_slice %arg7[%c2_i32_124, %c0_i32_127, %c0_i32_128] : memref<4x1024x128xbf16, #tpu.memory_space<any>> -> memref<1x1024x128xbf16, #tpu.memory_space<any>>
    %173 = tpu.memref_squeeze %172 : memref<1x1024x128xbf16, #tpu.memory_space<any>> -> memref<1024x128xbf16, #tpu.memory_space<any>>
    %c0_i32_129 = arith.constant 0 : i32
    %c0_i32_130 = arith.constant 0 : i32
    %174 = tpu.memref_slice %arg9[%c2_i32_125, %c0_i32_129, %c0_i32_130] : memref<4x1024x128xbf16, #tpu.memory_space<vmem>> -> memref<1x1024x128xbf16, #tpu.memory_space<vmem>>
    %175 = tpu.memref_squeeze %174 : memref<1x1024x128xbf16, #tpu.memory_space<vmem>> -> memref<1024x128xbf16, #tpu.memory_space<vmem>>
    %176 = tpu.memref_slice %arg13[%c2_i32_126] : memref<4x!tpu.dma_semaphore, #tpu.memory_space<semaphore_mem>> -> memref<1x!tpu.dma_semaphore, #tpu.memory_space<semaphore_mem>>
    %177 = tpu.memref_squeeze %176 : memref<1x!tpu.dma_semaphore, #tpu.memory_space<semaphore_mem>> -> memref<!tpu.dma_semaphore, #tpu.memory_space<semaphore_mem>>
    tpu.wait_dma2 semaphore(%177 : memref<!tpu.dma_semaphore, #tpu.memory_space<semaphore_mem>>) src(%173 : memref<1024x128xbf16, #tpu.memory_space<any>>) dst(%175 : memref<1024x128xbf16, #tpu.memory_space<vmem>>)
    %c0_131 = arith.constant 0 : index
    %c2048_132 = arith.constant 2048 : index
    %178 = vector.load %arg12[%c0_131, %c2048_132] : memref<2x4096xf32, #tpu.memory_space<vmem>>, vector<2x1024xf32>
    %179 = arith.truncf %178 : vector<2x1024xf32> to vector<2x1024xbf16>
    %c2_133 = arith.constant 2 : index
    %c0_134 = arith.constant 0 : index
    %c0_135 = arith.constant 0 : index
    %180 = vector.load %arg9[%c2_133, %c0_134, %c0_135] : memref<4x1024x128xbf16, #tpu.memory_space<vmem>>, vector<1x1024x128xbf16>
    %181 = vector.shape_cast %180 : vector<1x1024x128xbf16> to vector<1024x128xbf16>
    %cst_136 = arith.constant dense<0.000000e+00> : vector<2x128xf32>
    %182 = tpu.matmul %179, %181, %cst_136 {dimension_numbers = #tpu.dot_dimension_numbers<[1], [0], [0], [1], [0, 0, 1, 1], [], []>} : vector<2x1024xbf16>, vector<1024x128xbf16>, vector<2x128xf32> -> vector<2x128xf32>
    %183 = arith.addf %171, %182 : vector<2x128xf32>
    %c3_i32_137 = arith.constant 3 : i32
    %c3_i32_138 = arith.constant 3 : i32
    %c3_i32_139 = arith.constant 3 : i32
    %c0_i32_140 = arith.constant 0 : i32
    %c0_i32_141 = arith.constant 0 : i32
    %184 = tpu.memref_slice %arg7[%c3_i32_137, %c0_i32_140, %c0_i32_141] : memref<4x1024x128xbf16, #tpu.memory_space<any>> -> memref<1x1024x128xbf16, #tpu.memory_space<any>>
    %185 = tpu.memref_squeeze %184 : memref<1x1024x128xbf16, #tpu.memory_space<any>> -> memref<1024x128xbf16, #tpu.memory_space<any>>
    %c0_i32_142 = arith.constant 0 : i32
    %c0_i32_143 = arith.constant 0 : i32
    %186 = tpu.memref_slice %arg9[%c3_i32_138, %c0_i32_142, %c0_i32_143] : memref<4x1024x128xbf16, #tpu.memory_space<vmem>> -> memref<1x1024x128xbf16, #tpu.memory_space<vmem>>
    %187 = tpu.memref_squeeze %186 : memref<1x1024x128xbf16, #tpu.memory_space<vmem>> -> memref<1024x128xbf16, #tpu.memory_space<vmem>>
    %188 = tpu.memref_slice %arg13[%c3_i32_139] : memref<4x!tpu.dma_semaphore, #tpu.memory_space<semaphore_mem>> -> memref<1x!tpu.dma_semaphore, #tpu.memory_space<semaphore_mem>>
    %189 = tpu.memref_squeeze %188 : memref<1x!tpu.dma_semaphore, #tpu.memory_space<semaphore_mem>> -> memref<!tpu.dma_semaphore, #tpu.memory_space<semaphore_mem>>
    tpu.wait_dma2 semaphore(%189 : memref<!tpu.dma_semaphore, #tpu.memory_space<semaphore_mem>>) src(%185 : memref<1024x128xbf16, #tpu.memory_space<any>>) dst(%187 : memref<1024x128xbf16, #tpu.memory_space<vmem>>)
    %c0_144 = arith.constant 0 : index
    %c3072_145 = arith.constant 3072 : index
    %190 = vector.load %arg12[%c0_144, %c3072_145] : memref<2x4096xf32, #tpu.memory_space<vmem>>, vector<2x1024xf32>
    %191 = arith.truncf %190 : vector<2x1024xf32> to vector<2x1024xbf16>
    %c3 = arith.constant 3 : index
    %c0_146 = arith.constant 0 : index
    %c0_147 = arith.constant 0 : index
    %192 = vector.load %arg9[%c3, %c0_146, %c0_147] : memref<4x1024x128xbf16, #tpu.memory_space<vmem>>, vector<1x1024x128xbf16>
    %193 = vector.shape_cast %192 : vector<1x1024x128xbf16> to vector<1024x128xbf16>
    %cst_148 = arith.constant dense<0.000000e+00> : vector<2x128xf32>
    %194 = tpu.matmul %191, %193, %cst_148 {dimension_numbers = #tpu.dot_dimension_numbers<[1], [0], [0], [1], [0, 0, 1, 1], [], []>} : vector<2x1024xbf16>, vector<1024x128xbf16>, vector<2x128xf32> -> vector<2x128xf32>
    %195 = arith.addf %183, %194 : vector<2x128xf32>
    %c0_149 = arith.constant 0 : index
    %c0_150 = arith.constant 0 : index
    %196 = vector.load %arg8[%c0_149, %c0_150] : memref<2x128xf32, #tpu.memory_space<vmem>>, vector<2x128xf32>
    tpu.vector_store %arg8[%c0_149, %c0_150], %195 {strides = array<i32>} : memref<2x128xf32, #tpu.memory_space<vmem>>, vector<2x128xf32>,
    return
  }
}

</mosaic_0001>

<llo_original>
// kernel: perception_layer_pallas.1
$region0: #{perception_layer_pallas.1}
  #allocation0 [shape = 'u32[]', space=smem, size = 0x4, offset = 0x4, fixed_abs, tag = 'smem constant byte address 0x4 - core index']
  #allocation1 [shape = 'u32[144,128]{1,0:T(1,128)}', space=vmem, size = 0x12000, scoped, tag = 'internal scratch']
  #allocation2 [shape = 'bf16[4,1024,128]{2,1,0:T(16,128)(2,1)}', space=vmem, size = 0x100000, scoped, tag = 'scratch operand']
  #allocation3 [shape = 'f32[18,156]{1,0:T(8,128)}', space=vmem, size = 0x6000, scoped, tag = 'scratch operand']
  #allocation4 [shape = 'bf16[288,128]{1,0:T(16,128)(2,1)}', space=vmem, size = 0x12000, scoped, tag = 'scratch operand']
  #allocation5 [shape = 'f32[2,4096]{1,0:T(2,128)}', space=vmem, size = 0x8000, scoped, tag = 'scratch operand']
  #allocation6 [shape = 's32[4]{0}', space=sflag, size = 0x10, scoped, tag = 'scratch operand']
  #allocation9 [shape = 's32[]', space=sflag, size = 0x4, offset = 0, fixed_abs, tag = 'sflag constant byte address 0x0 - dummy sync flag']
  #allocation10 [shape = 's32[]', space=sflag, size = 0x4, offset = 0, fixed_abs, tag = 'sflag constant byte address 0x0 - dummy sync flag']
  #allocation11 [shape = 'u32[]', space=smem, size = 0x4, offset = 0x44, fixed_abs, tag = 'smem constant byte address 0x44 - assertion arg 0']
  #allocation12 [shape = 'u32[]', space=smem, size = 0x4, offset = 0x48, fixed_abs, tag = 'smem constant byte address 0x48 - assertion arg 1']
  #allocation13 [shape = 's32[]', space=sflag, size = 0x4, offset = 0, fixed_abs, tag = 'sflag constant byte address 0x0 - dummy sync flag']
  #allocation14 [shape = 's32[]', space=sflag, size = 0x4, offset = 0, fixed_abs, tag = 'sflag constant byte address 0x0 - dummy sync flag']
  #allocation15 [shape = 's32[]', space=sflag, size = 0x4, offset = 0, fixed_abs, tag = 'sflag constant byte address 0x0 - dummy sync flag']
  #allocation16 [shape = 's32[]', space=sflag, size = 0x4, offset = 0, fixed_abs, tag = 'sflag constant byte address 0x0 - dummy sync flag']
  #allocation17 [shape = 's32[]', space=sflag, size = 0x4, offset = 0, fixed_abs, tag = 'sflag constant byte address 0x0 - dummy sync flag']
  #allocation18 [shape = 's32[]', space=sflag, size = 0x4, offset = 0, fixed_abs, tag = 'sflag constant byte address 0x0 - dummy sync flag']
  %s0 = inlined_call_operand.vmem [shape: f32[2,183], index: 0, kind: input, shape index: {}]
  %s1 = inlined_call_operand.vmem [shape: f32[1,156], index: 1, kind: input, shape index: {}]
  %s2 = inlined_call_operand.vmem [shape: bf16[32,18], index: 2, kind: input, shape index: {}]
  %s3 = inlined_call_operand.vmem [shape: f32[32,1], index: 3, kind: input, shape index: {}]
  %s4 = inlined_call_operand.vmem [shape: bf16[64,288], index: 4, kind: input, shape index: {}]
  %s5 = inlined_call_operand.vmem [shape: f32[64,1], index: 5, kind: input, shape index: {}]
  %s6 = inlined_call_operand.vmem [shape: f32[1,128], index: 6, kind: input, shape index: {}]
  %s7 = inlined_call_operand.hbm [shape: bf16[4,1024,128], index: 7, kind: input, shape index: {}]
  %s8 = inlined_call_operand.hbm [shape: f32[2,128], index: 8, kind: output, shape index: {}]
  %s9 = sld [smem:[#allocation0]]
  $region54: #{perception_layer_pallas.1} parent=0
    _
  %s11 = ssub.s32 1, %s9
  %s12 = scalar_select 0, %s11, %s9
  $region1: #{perception_layer_pallas.1} parent=0
    #allocation7 [shape = 'u8[1024]{0}', space=vmem, size = 0x400, scoped, tag = 'output window, operand 0, single buffered']
    #allocation8 [shape = 's32[1]{0}', space=sflag, size = 0x4, scoped, tag = 'scoped memory for perception_layer_pallas.1']
    %13 = vsyncpa [#allocation8], 0
    // Predicated region
    $region2: #{perception_layer_pallas.1} parent=1 // pred_check
      _
    $region3: #{perception_layer_pallas.1} parent=1 // pred_check_branch
      %15 = sbr.rel (0) target = $region5
    $region4: #{perception_layer_pallas.1} parent=1 // pred_region
      _
    $region5: #{perception_layer_pallas.1} parent=1 // pred_fallthru
      _
    // Predicated region
    $region6: #{perception_layer_pallas.1} parent=1 // pred_check
      _
    $region7: #{perception_layer_pallas.1} parent=1 // pred_check_branch
      %17 = sbr.rel (0) target = $region9
    $region8: #{perception_layer_pallas.1} parent=1 // pred_region
      _
    $region9: #{perception_layer_pallas.1} parent=1 // pred_fallthru
      _
    // Predicated region
    $region10: #{perception_layer_pallas.1} parent=1 // pred_check
      _
    $region11: #{perception_layer_pallas.1} parent=1 // pred_check_branch
      %19 = sbr.rel (0) target = $region13
    $region12: #{perception_layer_pallas.1} parent=1 // pred_region
      _
    $region13: #{perception_layer_pallas.1} parent=1 // pred_fallthru
      _
    // Predicated region
    $region14: #{perception_layer_pallas.1} parent=1 // pred_check
      _
    $region15: #{perception_layer_pallas.1} parent=1 // pred_check_branch
      %21 = sbr.rel (0) target = $region17
    $region16: #{perception_layer_pallas.1} parent=1 // pred_region
      _
    $region17: #{perception_layer_pallas.1} parent=1 // pred_fallthru
      _
    // Predicated region
    $region18: #{perception_layer_pallas.1} parent=1 // pred_check
      _
    $region19: #{perception_layer_pallas.1} parent=1 // pred_check_branch
      %23 = sbr.rel (0) target = $region21
    $region20: #{perception_layer_pallas.1} parent=1 // pred_region
      _
    $region21: #{perception_layer_pallas.1} parent=1 // pred_fallthru
      _
    // Predicated region
    $region22: #{perception_layer_pallas.1} parent=1 // pred_check
      _
    $region23: #{perception_layer_pallas.1} parent=1 // pred_check_branch
      %25 = sbr.rel (0) target = $region25
    $region24: #{perception_layer_pallas.1} parent=1 // pred_region
      _
    $region25: #{perception_layer_pallas.1} parent=1 // pred_fallthru
      _
    // Predicated region
    $region26: #{perception_layer_pallas.1} parent=1 // pred_check
      _
    $region27: #{perception_layer_pallas.1} parent=1 // pred_check_branch
      %27 = sbr.rel (0) target = $region29
    $region28: #{perception_layer_pallas.1} parent=1 // pred_region
      _
    $region29: #{perception_layer_pallas.1} parent=1 // pred_fallthru
      _
    // Predicated region
    $region30: #{perception_layer_pallas.1} parent=1 // pred_check
      _
    $region31: #{perception_layer_pallas.1} parent=1 // pred_check_branch
      %30 = sbr.rel target = $region33
    $region32: #{perception_layer_pallas.1} parent=1 // pred_region
      %31 = sst [smem:[#allocation11]] [#allocation10]
      %32 = sst [smem:[#allocation12]] [#allocation9]
    $region33: #{perception_layer_pallas.1} parent=1 // pred_fallthru
      _
    %34 = shalt.err (0)
    %s36 = sshll.u32 [#allocation2], 4
    %s37 = int_to_ptr.vmem [resolvable:$true] %s36
    %39 = dma.hbm_to_vmem [thread:$0]  %s7, 8192, %s37, [#allocation6]
    %s40 = scalar_lea.hbm %s7, 8192
    %s41 = scalar_lea.vmem [#allocation2], 512
    %s42 = scalar_lea.sflag [#allocation6], 1
    // Predicated region
    $region34: #{perception_layer_pallas.1} parent=1 // pred_check
      _
    $region35: #{perception_layer_pallas.1} parent=1 // pred_check_branch
      %44 = sbr.rel target = $region37
    $region36: #{perception_layer_pallas.1} parent=1 // pred_region
      %45 = sst [smem:[#allocation11]] [#allocation14]
      %46 = sst [smem:[#allocation12]] [#allocation13]
    $region37: #{perception_layer_pallas.1} parent=1 // pred_fallthru
      _
    %48 = shalt.err (0)
    %s50 = sshll.u32 %s41, 4
    %s51 = int_to_ptr.vmem [resolvable:$true] %s50
    %53 = dma.hbm_to_vmem [thread:$0]  %s40, 8192, %s51, %s42
    %s54 = scalar_lea.hbm %s7, 16384
    %s55 = scalar_lea.vmem [#allocation2], 1024
    %s56 = scalar_lea.sflag [#allocation6], 2
    // Predicated region
    $region38: #{perception_layer_pallas.1} parent=1 // pred_check
      _
    $region39: #{perception_layer_pallas.1} parent=1 // pred_check_branch
      %58 = sbr.rel target = $region41
    $region40: #{perception_layer_pallas.1} parent=1 // pred_region
      %59 = sst [smem:[#allocation11]] [#allocation16]
      %60 = sst [smem:[#allocation12]] [#allocation15]
    $region41: #{perception_layer_pallas.1} parent=1 // pred_fallthru
      _
    %62 = shalt.err (0)
    %s64 = sshll.u32 %s55, 4
    %s65 = int_to_ptr.vmem [resolvable:$true] %s64
    %67 = dma.hbm_to_vmem [thread:$0]  %s54, 8192, %s65, %s56
    %s68 = scalar_lea.hbm %s7, 24576
    %s69 = scalar_lea.vmem [#allocation2], 1536
    %s70 = scalar_lea.sflag [#allocation6], 3
    // Predicated region
    $region42: #{perception_layer_pallas.1} parent=1 // pred_check
      _
    $region43: #{perception_layer_pallas.1} parent=1 // pred_check_branch
      %72 = sbr.rel target = $region45
    $region44: #{perception_layer_pallas.1} parent=1 // pred_region
      %73 = sst [smem:[#allocation11]] [#allocation18]
      %74 = sst [smem:[#allocation12]] [#allocation17]
    $region45: #{perception_layer_pallas.1} parent=1 // pred_fallthru
      _
    %76 = shalt.err (0)
    %s78 = sshll.u32 %s69, 4
    %s79 = int_to_ptr.vmem [resolvable:$true] %s78
    %81 = dma.hbm_to_vmem [thread:$0]  %s68, 8192, %s79, %s70
    %v82 = vld [vmem:[%s0] sm:$0xf]
    %v85 = vunpack.c.l.s4 1983009808
    %v86 = vunpack.c.0.s8 %v85
    %v87 = vlaneseq
    %v88 = vshrl.u32 %v87, 7
    %v89 = vsub.s32 %v86, %v88
    %v90 = vrot.slane %v82, %v89
    %v91 = vcombine.high %v90, %v90
    %94 = vst [vmem:[#allocation3] sm:$0x3] %v90
    %vm95 = vcmask 222208
    %96 = vst.msk [vmem:[#allocation3 + $0x8] sm:$0x3] %vm95, %v91
    %v97 = vcombine.low %v82, %v82
    %v99 = vunpack.c.l.s4 1983009808
    %v100 = vunpack.c.0.s8 %v99
    %v101 = vlaneseq
    %v102 = vshrl.u32 %v101, 7
    %v103 = vsub.s32 %v100, %v102
    %v104 = vrot.slane %v97, %v103
    %v105 = vcombine.high %v104, %v104
    %106 = vrot.lane.b32.xlu0 %v104, 127
    %v107 = vpop.permute.xlu0 %106
    %108 = vrot.lane.b32.xlu0 %v105, 127
    %v109 = vpop.permute.xlu0 %108
    %vm110 = vcmask 1039360
    %v111 = vsel %vm110, %v107, %v109
    %114 = vst [vmem:[#allocation3] sm:$0xc] %v111
    %vm115 = vcmask 224258
    %116 = vst.msk [vmem:[#allocation3 + $0x8] sm:$0xc] %vm115, %v109
    %v117 = vcombine.low %v90, %v90
    %118 = vrot.lane.b32.xlu0 %v117, 126
    %v119 = vpop.permute.xlu0 %118
    %120 = vrot.lane.b32.xlu0 %v90, 126
    %v121 = vpop.permute.xlu0 %120
    %vm122 = vcmask 1031168
    %v123 = vsel %vm122, %v119, %v121
    %126 = vst [vmem:[#allocation3] sm:$0x30] %v123
    %vm127 = vcmask 226308
    %128 = vst.msk [vmem:[#allocation3 + $0x8] sm:$0x30] %vm127, %v121
    %v129 = vcombine.low %v104, %v104
    %130 = vrot.lane.b32.xlu0 %v129, 116
    %v131 = vpop.permute.xlu0 %130
    %132 = vrot.lane.b32.xlu0 %v104, 116
    %v133 = vpop.permute.xlu0 %132
    %vm134 = vcmask 949248
    %v135 = vsel %vm134, %v131, %v133
    %138 = vst [vmem:[#allocation3] sm:$0xc0] %v135
    %vm139 = vcmask 228358
    %140 = vst.msk [vmem:[#allocation3 + $0x8] sm:$0xc0] %vm139, %v133
    %141 = vrot.lane.b32.xlu0 %v90, 115
    %v142 = vpop.permute.xlu0 %141
    %143 = vrot.lane.b32.xlu0 %v91, 115
    %v144 = vpop.permute.xlu0 %143
    %vm145 = vcmask 941056
    %v146 = vsel %vm145, %v142, %v144
    %149 = vst [vmem:[#allocation3 + $0x10] sm:$0x3] %v146
    %150 = vst.msk [vmem:[#allocation3 + $0x18] sm:$0x3] %vm95, %v144
    %151 = vrot.lane.b32.xlu0 %v104, 114
    %v152 = vpop.permute.xlu0 %151
    %153 = vrot.lane.b32.xlu0 %v105, 114
    %v154 = vpop.permute.xlu0 %153
    %vm155 = vcmask 932864
    %v156 = vsel %vm155, %v152, %v154
    %159 = vst [vmem:[#allocation3 + $0x10] sm:$0xc] %v156
    %160 = vst.msk [vmem:[#allocation3 + $0x18] sm:$0xc] %vm115, %v154
    %161 = vrot.lane.b32.xlu0 %v117, 104
    %v162 = vpop.permute.xlu0 %161
    %163 = vrot.lane.b32.xlu0 %v90, 104
    %v164 = vpop.permute.xlu0 %163
    %vm165 = vcmask 850944
    %v166 = vsel %vm165, %v162, %v164
    %169 = vst [vmem:[#allocation3 + $0x10] sm:$0x30] %v166
    %170 = vst.msk [vmem:[#allocation3 + $0x18] sm:$0x30] %vm127, %v164
    %171 = vrot.lane.b32.xlu0 %v129, 103
    %v172 = vpop.permute.xlu0 %171
    %173 = vrot.lane.b32.xlu0 %v104, 103
    %v174 = vpop.permute.xlu0 %173
    %vm175 = vcmask 842752
    %v176 = vsel %vm175, %v172, %v174
    %179 = vst [vmem:[#allocation3 + $0x10] sm:$0xc0] %v176
    %180 = vst.msk [vmem:[#allocation3 + $0x18] sm:$0xc0] %vm139, %v174
    %181 = vrot.lane.b32.xlu0 %v90, 102
    %v182 = vpop.permute.xlu0 %181
    %183 = vrot.lane.b32.xlu0 %v91, 102
    %v184 = vpop.permute.xlu0 %183
    %vm185 = vcmask 834560
    %v186 = vsel %vm185, %v182, %v184
    %189 = vst [vmem:[#allocation3 + $0x20] sm:$0x3] %v186
    %190 = vst.msk [vmem:[#allocation3 + $0x28] sm:$0x3] %vm95, %v184
    %v191 = vld [vmem:[%s2] sm:$0xf]
    %v192 = vld [vmem:[%s2 + $0x4] sm:$0xf]
    %v193 = vld [vmem:[%s2 + $0x8] sm:$0xf]
    %v194 = vld [vmem:[%s2 + $0xc] sm:$0xf]
    %v195 = vld [vmem:[#allocation3] sm:$0xff]
    %v196 = vld [vmem:[#allocation3 + $0x8] sm:$0xff]
    %v197 = vld [vmem:[#allocation3 + $0x10] sm:$0xff]
    %v198 = vld [vmem:[#allocation3 + $0x18] sm:$0xff]
    %v199 = vld [vmem:[#allocation3 + $0x20] sm:$0x3]
    %v200 = vld [vmem:[#allocation3 + $0x28] sm:$0x3]
    %v201 = vpack.c.bf16 %v197, %v195
    %v202 = vpack.c.bf16 %v198, %v196
    %v203 = vpack.c.bf16 %v199, %v199
    %v204 = vpack.c.bf16 %v200, %v200
    %v205 = vld [vmem:[%s3] sm:$0xff]
    %v206 = vld [vmem:[%s3 + $0x8] sm:$0xff]
    %v207 = vld [vmem:[%s3 + $0x10] sm:$0xff]
    %v208 = vld [vmem:[%s3 + $0x18] sm:$0xff]
    %210 = vset.pattern.permute.xlu0 0
    %211 = vperm.xlu0 %210, %v205
    %v212 = vpop.permute.xlu0 %211
    %215 = vset.pattern.permute.xlu0 0
    %216 = vperm.xlu0 %215, %v206
    %v217 = vpop.permute.xlu0 %216
    %220 = vset.pattern.permute.xlu0 0
    %221 = vperm.xlu0 %220, %v207
    %v222 = vpop.permute.xlu0 %221
    %225 = vset.pattern.permute.xlu0 0
    %226 = vperm.xlu0 %225, %v208
    %v227 = vpop.permute.xlu0 %226
    %v233 = vunpack.c.l.b16 %v191
    %v234 = vunpack.c.l.b16 %v192
    %v235 = vunpack.c.l.b16 %v193
    %v236 = vunpack.c.l.b16 %v194
    %v237 = vpack.c.b16 %v234, %v233
    %v238 = vpack.c.b16 %v236, %v235
    %vm239 = vcmask 146432
    %v241 = vsel %vm239, %v237, 0
    %v244 = vsel %vm239, %v238, 0
    %vm246 = vcmask 1040384
    %v248 = vsel %vm246, %v203, 0
    %v251 = vsel %vm246, %v204, 0
    %253 = vmatprep.subr.bf16.mxu0 %v202
    %254 = vmatpush1.bf16.msra.mxu0 %v201
    %255 = vmatprep.subr.bf16.mxu0 %v251
    %256 = vmatpush1.bf16.msra.mxu0 %v248
    %257 = vmatprep.subr.bf16.mxu0 0
    %258 = vmatpush1.bf16.msra.mxu0 0
    %259 = vmatprep.subr.bf16.mxu0 0
    %260 = vmatpush1.bf16.msra.mxu0 0
    %261 = vmatprep.subr.bf16.mxu0 0
    %262 = vmatpush1.bf16.msra.mxu0 0
    %263 = vmatprep.subr.bf16.mxu0 0
    %264 = vmatpush1.bf16.msra.mxu0 0
    %265 = vmatprep.subr.bf16.mxu0 0
    %266 = vmatpush1.bf16.msra.mxu0 0
    %267 = vmatprep.subr.bf16.mxu0 0
    %268 = vmatpush1.bf16.msra.mxu0 0
    %269 = vmatprep.subr.bf16.mxu0 0
    %270 = vmatpush1.bf16.msra.mxu0 0
    %271 = vmatprep.subr.bf16.mxu0 0
    %272 = vmatpush1.bf16.msra.mxu0 0
    %273 = vmatprep.subr.bf16.mxu0 0
    %274 = vmatpush1.bf16.msra.mxu0 0
    %275 = vmatprep.subr.bf16.mxu0 0
    %276 = vmatpush1.bf16.msra.mxu0 0
    %277 = vmatprep.subr.bf16.mxu0 0
    %278 = vmatpush1.bf16.msra.mxu0 0
    %279 = vmatprep.subr.bf16.mxu0 0
    %280 = vmatpush1.bf16.msra.mxu0 0
    %281 = vmatprep.subr.bf16.mxu0 0
    %282 = vmatpush1.bf16.msra.mxu0 0
    %283 = vmatprep.subr.bf16.mxu0 0
    %284 = vmatpush1.bf16.msra.mxu0 0
    %285 = vmatprep.mubr.bf16.mxu0 0
    %286 = vmatmul.mubr.bf16.gmra.mrb[0].mxu0 %v241
    %v287 = vpop.f32.mrb[0].mxu0
    %v288 = vadd.f32 %v212, %v287
    %v289 = vpop.f32.mrb[0].mxu0
    %v290 = vadd.f32 %v212, %v289
    %v291 = vpop.f32.mrb[0].mxu0
    %v292 = vadd.f32 %v217, %v291
    %v293 = vpop.f32.mrb[0].mxu0
    %v294 = vadd.f32 %v217, %v293
    %295 = vmatprep.mubr.bf16.mxu0 0
    %296 = vmatmul.mubr.bf16.gmra.mrb[0].mxu0 %v244
    %v297 = vpop.f32.mrb[0].mxu0
    %v298 = vadd.f32 %v222, %v297
    %v299 = vpop.f32.mrb[0].mxu0
    %v300 = vadd.f32 %v222, %v299
    %v301 = vpop.f32.mrb[0].mxu0
    %v302 = vadd.f32 %v227, %v301
    %v303 = vpop.f32.mrb[0].mxu0
    %v304 = vadd.f32 %v227, %v303
    %305 = vdwg.mxu0
    %v306 = vmax.f32 %v288, 0.0
    %v307 = vmax.f32 %v290, 0.0
    %v308 = vmax.f32 %v292, 0.0
    %v309 = vmax.f32 %v294, 0.0
    %v310 = vmax.f32 %v298, 0.0
    %v311 = vmax.f32 %v300, 0.0
    %v312 = vmax.f32 %v302, 0.0
    %v313 = vmax.f32 %v304, 0.0
    %v314 = vld [vmem:[%s1] sm:$0x3]
    %v316 = vlaneseq
    %v317 = vshrl.u32 %v316, 7
    %v318 = vsub.s32 0, %v317
    %v319 = vrot.slane %v314, %v318
    %v320 = vlaneseq
    %v321 = vshrl.u32 %v320, 7
    %v322 = vsub.s32 1, %v321
    %v323 = vrot.slane %v314, %v322
    %v326 = vmul.f32 %v306, %v319
    %v327 = vmul.f32 %v307, %v323
    %v328 = vmul.f32 %v308, %v319
    %v329 = vmul.f32 %v309, %v323
    %v330 = vmul.f32 %v310, %v319
    %v331 = vmul.f32 %v311, %v323
    %v332 = vmul.f32 %v312, %v319
    %v333 = vmul.f32 %v313, %v323
    %v334 = vpack.c.bf16 %v328, %v326
    %v335 = vpack.c.bf16 %v329, %v327
    %v336 = vpack.c.bf16 %v332, %v330
    %v337 = vpack.c.bf16 %v333, %v331
    %338 = vst [vmem:[#allocation4] sm:$0xff] %v334
    %339 = vst [vmem:[#allocation4 + $0x8] sm:$0xff] %v336
    %344 = vrot.lane.b32.xlu0 %v334, 127
    %v345 = vpop.permute.xlu0 %344
    %346 = vrot.lane.b32.xlu0 %v335, 127
    %v347 = vpop.permute.xlu0 %346
    %348 = vrot.lane.b32.xlu0 %v336, 127
    %v349 = vpop.permute.xlu0 %348
    %350 = vrot.lane.b32.xlu0 %v337, 127
    %v351 = vpop.permute.xlu0 %350
    %vm352 = vcmask 1039360
    %v353 = vsel %vm352, %v345, %v347
    %v354 = vsel %vm352, %v349, %v351
    %357 = vst [vmem:[#allocation4 + $0x10] sm:$0xff] %v353
    %358 = vst [vmem:[#allocation4 + $0x18] sm:$0xff] %v354
    %359 = vrot.lane.b32.xlu0 %v334, 126
    %v360 = vpop.permute.xlu0 %359
    %361 = vrot.lane.b32.xlu0 %v335, 126
    %v362 = vpop.permute.xlu0 %361
    %363 = vrot.lane.b32.xlu0 %v336, 126
    %v364 = vpop.permute.xlu0 %363
    %365 = vrot.lane.b32.xlu0 %v337, 126
    %v366 = vpop.permute.xlu0 %365
    %vm367 = vcmask 1031168
    %v368 = vsel %vm367, %v360, %v362
    %v369 = vsel %vm367, %v364, %v366
    %372 = vst [vmem:[#allocation4 + $0x20] sm:$0xff] %v368
    %373 = vst [vmem:[#allocation4 + $0x28] sm:$0xff] %v369
    %374 = vrot.lane.b32.xlu0 %v334, 116
    %v375 = vpop.permute.xlu0 %374
    %376 = vrot.lane.b32.xlu0 %v335, 116
    %v377 = vpop.permute.xlu0 %376
    %378 = vrot.lane.b32.xlu0 %v336, 116
    %v379 = vpop.permute.xlu0 %378
    %380 = vrot.lane.b32.xlu0 %v337, 116
    %v381 = vpop.permute.xlu0 %380
    %vm382 = vcmask 949248
    %v383 = vsel %vm382, %v375, %v377
    %v384 = vsel %vm382, %v379, %v381
    %387 = vst [vmem:[#allocation4 + $0x30] sm:$0xff] %v383
    %388 = vst [vmem:[#allocation4 + $0x38] sm:$0xff] %v384
    %389 = vrot.lane.b32.xlu0 %v334, 115
    %v390 = vpop.permute.xlu0 %389
    %391 = vrot.lane.b32.xlu0 %v335, 115
    %v392 = vpop.permute.xlu0 %391
    %393 = vrot.lane.b32.xlu0 %v336, 115
    %v394 = vpop.permute.xlu0 %393
    %395 = vrot.lane.b32.xlu0 %v337, 115
    %v396 = vpop.permute.xlu0 %395
    %vm397 = vcmask 941056
    %v398 = vsel %vm397, %v390, %v392
    %v399 = vsel %vm397, %v394, %v396
    %402 = vst [vmem:[#allocation4 + $0x40] sm:$0xff] %v398
    %403 = vst [vmem:[#allocation4 + $0x48] sm:$0xff] %v399
    %404 = vrot.lane.b32.xlu0 %v334, 114
    %v405 = vpop.permute.xlu0 %404
    %406 = vrot.lane.b32.xlu0 %v335, 114
    %v407 = vpop.permute.xlu0 %406
    %408 = vrot.lane.b32.xlu0 %v336, 114
    %v409 = vpop.permute.xlu0 %408
    %410 = vrot.lane.b32.xlu0 %v337, 114
    %v411 = vpop.permute.xlu0 %410
    %vm412 = vcmask 932864
    %v413 = vsel %vm412, %v405, %v407
    %v414 = vsel %vm412, %v409, %v411
    %417 = vst [vmem:[#allocation4 + $0x50] sm:$0xff] %v413
    %418 = vst [vmem:[#allocation4 + $0x58] sm:$0xff] %v414
    %419 = vrot.lane.b32.xlu0 %v334, 104
    %v420 = vpop.permute.xlu0 %419
    %421 = vrot.lane.b32.xlu0 %v335, 104
    %v422 = vpop.permute.xlu0 %421
    %423 = vrot.lane.b32.xlu0 %v336, 104
    %v424 = vpop.permute.xlu0 %423
    %425 = vrot.lane.b32.xlu0 %v337, 104
    %v426 = vpop.permute.xlu0 %425
    %vm427 = vcmask 850944
    %v428 = vsel %vm427, %v420, %v422
    %v429 = vsel %vm427, %v424, %v426
    %432 = vst [vmem:[#allocation4 + $0x60] sm:$0xff] %v428
    %433 = vst [vmem:[#allocation4 + $0x68] sm:$0xff] %v429
    %434 = vrot.lane.b32.xlu0 %v334, 103
    %v435 = vpop.permute.xlu0 %434
    %436 = vrot.lane.b32.xlu0 %v335, 103
    %v437 = vpop.permute.xlu0 %436
    %438 = vrot.lane.b32.xlu0 %v336, 103
    %v439 = vpop.permute.xlu0 %438
    %440 = vrot.lane.b32.xlu0 %v337, 103
    %v441 = vpop.permute.xlu0 %440
    %vm442 = vcmask 842752
    %v443 = vsel %vm442, %v435, %v437
    %v444 = vsel %vm442, %v439, %v441
    %447 = vst [vmem:[#allocation4 + $0x70] sm:$0xff] %v443
    %448 = vst [vmem:[#allocation4 + $0x78] sm:$0xff] %v444
    %449 = vrot.lane.b32.xlu0 %v334, 102
    %v450 = vpop.permute.xlu0 %449
    %451 = vrot.lane.b32.xlu0 %v335, 102
    %v452 = vpop.permute.xlu0 %451
    %453 = vrot.lane.b32.xlu0 %v336, 102
    %v454 = vpop.permute.xlu0 %453
    %455 = vrot.lane.b32.xlu0 %v337, 102
    %v456 = vpop.permute.xlu0 %455
    %vm457 = vcmask 834560
    %v458 = vsel %vm457, %v450, %v452
    %v459 = vsel %vm457, %v454, %v456
    %462 = vst [vmem:[#allocation4 + $0x80] sm:$0xff] %v458
    %463 = vst [vmem:[#allocation4 + $0x88] sm:$0xff] %v459
    %v464 = vld [vmem:[%s4] sm:$0xff]
    %v465 = vld [vmem:[%s4 + $0x8] sm:$0xf]
    %v466 = vld [vmem:[%s4 + $0xc] sm:$0xff]
    %v467 = vld [vmem:[%s4 + $0x14] sm:$0xf]
    %v468 = vld [vmem:[%s4 + $0x18] sm:$0xff]
    %v469 = vld [vmem:[%s4 + $0x20] sm:$0xf]
    %v470 = vld [vmem:[%s4 + $0x24] sm:$0xff]
    %v471 = vld [vmem:[%s4 + $0x2c] sm:$0xf]
    %v472 = vld [vmem:[%s4 + $0x30] sm:$0xff]
    %v473 = vld [vmem:[%s4 + $0x38] sm:$0xf]
    %v474 = vld [vmem:[%s4 + $0x3c] sm:$0xff]
    %v475 = vld [vmem:[%s4 + $0x44] sm:$0xf]
    %v476 = vld [vmem:[%s4 + $0x48] sm:$0xff]
    %v477 = vld [vmem:[%s4 + $0x50] sm:$0xf]
    %v478 = vld [vmem:[%s4 + $0x54] sm:$0xff]
    %v479 = vld [vmem:[%s4 + $0x5c] sm:$0xf]
    %v480 = vld [vmem:[#allocation4] sm:$0xff]
    %v481 = vld [vmem:[#allocation4 + $0x8] sm:$0xff]
    %v482 = vld [vmem:[#allocation4 + $0x10] sm:$0xff]
    %v483 = vld [vmem:[#allocation4 + $0x18] sm:$0xff]
    %v484 = vld [vmem:[#allocation4 + $0x20] sm:$0xff]
    %v485 = vld [vmem:[#allocation4 + $0x28] sm:$0xff]
    %v486 = vld [vmem:[#allocation4 + $0x30] sm:$0xff]
    %v487 = vld [vmem:[#allocation4 + $0x38] sm:$0xff]
    %v488 = vld [vmem:[#allocation4 + $0x40] sm:$0xff]
    %v489 = vld [vmem:[#allocation4 + $0x48] sm:$0xff]
    %v490 = vld [vmem:[#allocation4 + $0x50] sm:$0xff]
    %v491 = vld [vmem:[#allocation4 + $0x58] sm:$0xff]
    %v492 = vld [vmem:[#allocation4 + $0x60] sm:$0xff]
    %v493 = vld [vmem:[#allocation4 + $0x68] sm:$0xff]
    %v494 = vld [vmem:[#allocation4 + $0x70] sm:$0xff]
    %v495 = vld [vmem:[#allocation4 + $0x78] sm:$0xff]
    %v496 = vld [vmem:[#allocation4 + $0x80] sm:$0xff]
    %v497 = vld [vmem:[#allocation4 + $0x88] sm:$0xff]
    %v498 = vld [vmem:[%s5] sm:$0xff]
    %v499 = vld [vmem:[%s5 + $0x8] sm:$0xff]
    %v500 = vld [vmem:[%s5 + $0x10] sm:$0xff]
    %v501 = vld [vmem:[%s5 + $0x18] sm:$0xff]
    %v502 = vld [vmem:[%s5 + $0x20] sm:$0xff]
    %v503 = vld [vmem:[%s5 + $0x28] sm:$0xff]
    %v504 = vld [vmem:[%s5 + $0x30] sm:$0xff]
    %v505 = vld [vmem:[%s5 + $0x38] sm:$0xff]
    %507 = vset.pattern.permute.xlu0 0
    %508 = vperm.xlu0 %507, %v498
    %v509 = vpop.permute.xlu0 %508
    %512 = vset.pattern.permute.xlu0 0
    %513 = vperm.xlu0 %512, %v499
    %v514 = vpop.permute.xlu0 %513
    %517 = vset.pattern.permute.xlu0 0
    %518 = vperm.xlu0 %517, %v500
    %v519 = vpop.permute.xlu0 %518
    %522 = vset.pattern.permute.xlu0 0
    %523 = vperm.xlu0 %522, %v501
    %v524 = vpop.permute.xlu0 %523
    %527 = vset.pattern.permute.xlu0 0
    %528 = vperm.xlu0 %527, %v502
    %v529 = vpop.permute.xlu0 %528
    %532 = vset.pattern.permute.xlu0 0
    %533 = vperm.xlu0 %532, %v503
    %v534 = vpop.permute.xlu0 %533
    %537 = vset.pattern.permute.xlu0 0
    %538 = vperm.xlu0 %537, %v504
    %v539 = vpop.permute.xlu0 %538
    %542 = vset.pattern.permute.xlu0 0
    %543 = vperm.xlu0 %542, %v505
    %v544 = vpop.permute.xlu0 %543
    %v562 = vunpack.c.l.b16 %v464
    %v563 = vunpack.c.h.b16 %v464
    %v564 = vunpack.c.l.b16 %v465
    %v565 = vunpack.c.l.b16 %v466
    %v566 = vunpack.c.h.b16 %v466
    %v567 = vunpack.c.l.b16 %v467
    %v568 = vunpack.c.l.b16 %v468
    %v569 = vunpack.c.h.b16 %v468
    %v570 = vunpack.c.l.b16 %v469
    %v571 = vunpack.c.l.b16 %v470
    %v572 = vunpack.c.h.b16 %v470
    %v573 = vunpack.c.l.b16 %v471
    %v574 = vunpack.c.l.b16 %v472
    %v575 = vunpack.c.h.b16 %v472
    %v576 = vunpack.c.l.b16 %v473
    %v577 = vunpack.c.l.b16 %v474
    %v578 = vunpack.c.h.b16 %v474
    %v579 = vunpack.c.l.b16 %v475
    %v580 = vunpack.c.l.b16 %v476
    %v581 = vunpack.c.h.b16 %v476
    %v582 = vunpack.c.l.b16 %v477
    %v583 = vunpack.c.l.b16 %v478
    %v584 = vunpack.c.h.b16 %v478
    %v585 = vunpack.c.l.b16 %v479
    %v586 = vpack.c.b16 %v565, %v562
    %v587 = vpack.c.b16 %v566, %v563
    %v588 = vpack.c.b16 %v567, %v564
    %v589 = vpack.c.b16 %v571, %v568
    %v590 = vpack.c.b16 %v572, %v569
    %v591 = vpack.c.b16 %v573, %v570
    %v592 = vpack.c.b16 %v577, %v574
    %v593 = vpack.c.b16 %v578, %v575
    %v594 = vpack.c.b16 %v579, %v576
    %v595 = vpack.c.b16 %v583, %v580
    %v596 = vpack.c.b16 %v584, %v581
    %v597 = vpack.c.b16 %v585, %v582
    %vm606 = vcmask 261120
    %v608 = vsel %vm606, %v588, 0
    %v611 = vsel %vm606, %v591, 0
    %v614 = vsel %vm606, %v594, 0
    %v617 = vsel %vm606, %v597, 0
    %619 = vmatprep.subr.bf16.mxu0 0
    %620 = vmatpush1.bf16.msra.mxu0 %v480
    %621 = vmatprep.subr.bf16.mxu0 0
    %622 = vmatpush1.bf16.msra.mxu0 %v481
    %623 = vmatprep.subr.bf16.mxu0 0
    %624 = vmatpush1.bf16.msra.mxu0 %v482
    %625 = vmatprep.subr.bf16.mxu0 0
    %626 = vmatpush1.bf16.msra.mxu0 %v483
    %627 = vmatprep.subr.bf16.mxu0 0
    %628 = vmatpush1.bf16.msra.mxu0 %v484
    %629 = vmatprep.subr.bf16.mxu0 0
    %630 = vmatpush1.bf16.msra.mxu0 %v485
    %631 = vmatprep.subr.bf16.mxu0 0
    %632 = vmatpush1.bf16.msra.mxu0 %v486
    %633 = vmatprep.subr.bf16.mxu0 0
    %634 = vmatpush1.bf16.msra.mxu0 %v487
    %635 = vmatprep.subr.bf16.mxu0 0
    %636 = vmatpush1.bf16.msra.mxu0 %v488
    %637 = vmatprep.subr.bf16.mxu0 0
    %638 = vmatpush1.bf16.msra.mxu0 %v489
    %639 = vmatprep.subr.bf16.mxu0 0
    %640 = vmatpush1.bf16.msra.mxu0 %v490
    %641 = vmatprep.subr.bf16.mxu0 0
    %642 = vmatpush1.bf16.msra.mxu0 %v491
    %643 = vmatprep.subr.bf16.mxu0 0
    %644 = vmatpush1.bf16.msra.mxu0 %v492
    %645 = vmatprep.subr.bf16.mxu0 0
    %646 = vmatpush1.bf16.msra.mxu0 %v493
    %647 = vmatprep.subr.bf16.mxu0 0
    %648 = vmatpush1.bf16.msra.mxu0 %v494
    %649 = vmatprep.subr.bf16.mxu0 0
    %650 = vmatpush1.bf16.msra.mxu0 %v495
    %651 = vmatprep.mubr.bf16.mxu0 %v587
    %652 = vmatmul.mubr.bf16.gmra.mrb[0].mxu0 %v586
    %v653 = vpop.f32.mrb[0].mxu0
    %v654 = vadd.f32 %v509, %v653
    %v655 = vpop.f32.mrb[0].mxu0
    %v656 = vpop.f32.mrb[0].mxu0
    %v657 = vadd.f32 %v514, %v656
    %v658 = vpop.f32.mrb[0].mxu0
    %659 = vmatprep.mubr.bf16.mxu0 %v590
    %660 = vmatmul.mubr.bf16.gmra.mrb[0].mxu0 %v589
    %v661 = vpop.f32.mrb[0].mxu0
    %v662 = vadd.f32 %v519, %v661
    %v663 = vpop.f32.mrb[0].mxu0
    %v664 = vpop.f32.mrb[0].mxu0
    %v665 = vadd.f32 %v524, %v664
    %v666 = vpop.f32.mrb[0].mxu0
    %667 = vmatprep.mubr.bf16.mxu0 %v593
    %668 = vmatmul.mubr.bf16.gmra.mrb[0].mxu0 %v592
    %v669 = vpop.f32.mrb[0].mxu0
    %v670 = vadd.f32 %v529, %v669
    %v671 = vpop.f32.mrb[0].mxu0
    %v672 = vpop.f32.mrb[0].mxu0
    %v673 = vadd.f32 %v534, %v672
    %v674 = vpop.f32.mrb[0].mxu0
    %675 = vmatprep.mubr.bf16.mxu0 %v596
    %676 = vmatmul.mubr.bf16.gmra.mrb[0].mxu0 %v595
    %v677 = vpop.f32.mrb[0].mxu0
    %v678 = vadd.f32 %v539, %v677
    %v679 = vpop.f32.mrb[0].mxu0
    %v680 = vpop.f32.mrb[0].mxu0
    %v681 = vadd.f32 %v544, %v680
    %v682 = vpop.f32.mrb[0].mxu0
    %683 = vdwg.mxu0
    %684 = vmatprep.subr.bf16.mxu0 0
    %685 = vmatpush1.bf16.msra.mxu0 %v496
    %686 = vmatprep.subr.bf16.mxu0 0
    %687 = vmatpush1.bf16.msra.mxu0 %v497
    %688 = vmatprep.subr.bf16.mxu0 0
    %689 = vmatpush1.bf16.msra.mxu0 0
    %690 = vmatprep.subr.bf16.mxu0 0
    %691 = vmatpush1.bf16.msra.mxu0 0
    %692 = vmatprep.subr.bf16.mxu0 0
    %693 = vmatpush1.bf16.msra.mxu0 0
    %694 = vmatprep.subr.bf16.mxu0 0
    %695 = vmatpush1.bf16.msra.mxu0 0
    %696 = vmatprep.subr.bf16.mxu0 0
    %697 = vmatpush1.bf16.msra.mxu0 0
    %698 = vmatprep.subr.bf16.mxu0 0
    %699 = vmatpush1.bf16.msra.mxu0 0
    %700 = vmatprep.subr.bf16.mxu0 0
    %701 = vmatpush1.bf16.msra.mxu0 0
    %702 = vmatprep.subr.bf16.mxu0 0
    %703 = vmatpush1.bf16.msra.mxu0 0
    %704 = vmatprep.subr.bf16.mxu0 0
    %705 = vmatpush1.bf16.msra.mxu0 0
    %706 = vmatprep.subr.bf16.mxu0 0
    %707 = vmatpush1.bf16.msra.mxu0 0
    %708 = vmatprep.subr.bf16.mxu0 0
    %709 = vmatpush1.bf16.msra.mxu0 0
    %710 = vmatprep.subr.bf16.mxu0 0
    %711 = vmatpush1.bf16.msra.mxu0 0
    %712 = vmatprep.subr.bf16.mxu0 0
    %713 = vmatpush1.bf16.msra.mxu0 0
    %714 = vmatprep.subr.bf16.mxu0 0
    %715 = vmatpush1.bf16.msra.mxu0 0
    %716 = vmatprep.mubr.bf16.mxu0 0
    %717 = vmatmul.mubr.bf16.gmra.mrb[0].mxu0 %v608
    %v718 = vpop.f32.mrb[0].mxu0
    %v719 = vadd.f32 %v654, %v718
    %v720 = vpop.f32.mrb[0].mxu0
    %v721 = vpop.f32.mrb[0].mxu0
    %v722 = vadd.f32 %v657, %v721
    %v723 = vpop.f32.mrb[0].mxu0
    %724 = vmatprep.mubr.bf16.mxu0 0
    %725 = vmatmul.mubr.bf16.gmra.mrb[0].mxu0 %v611
    %v726 = vpop.f32.mrb[0].mxu0
    %v727 = vadd.f32 %v662, %v726
    %v728 = vpop.f32.mrb[0].mxu0
    %v729 = vpop.f32.mrb[0].mxu0
    %v730 = vadd.f32 %v665, %v729
    %v731 = vpop.f32.mrb[0].mxu0
    %732 = vmatprep.mubr.bf16.mxu0 0
    %733 = vmatmul.mubr.bf16.gmra.mrb[0].mxu0 %v614
    %v734 = vpop.f32.mrb[0].mxu0
    %v735 = vadd.f32 %v670, %v734
    %v736 = vpop.f32.mrb[0].mxu0
    %v737 = vpop.f32.mrb[0].mxu0
    %v738 = vadd.f32 %v673, %v737
    %v739 = vpop.f32.mrb[0].mxu0
    %740 = vmatprep.mubr.bf16.mxu0 0
    %741 = vmatmul.mubr.bf16.gmra.mrb[0].mxu0 %v617
    %v742 = vpop.f32.mrb[0].mxu0
    %v743 = vadd.f32 %v678, %v742
    %v744 = vpop.f32.mrb[0].mxu0
    %v745 = vpop.f32.mrb[0].mxu0
    %v746 = vadd.f32 %v681, %v745
    %v747 = vpop.f32.mrb[0].mxu0
    %748 = vdwg.mxu0
    %v749 = vmax.f32 %v719, 0.0
    %v750 = vmax.f32 %v722, 0.0
    %v751 = vmax.f32 %v727, 0.0
    %v752 = vmax.f32 %v730, 0.0
    %v753 = vmax.f32 %v735, 0.0
    %v754 = vmax.f32 %v738, 0.0
    %v755 = vmax.f32 %v743, 0.0
    %v756 = vmax.f32 %v746, 0.0
    %757 = vst [vmem:[#allocation5] sm:$0x3] %v749
    %v760 = vunpack.c.l.s4 1983009808
    %v761 = vunpack.c.0.s8 %v760
    %v762 = vlaneseq
    %v763 = vshrl.u32 %v762, 7
    %v764 = vsub.s32 %v761, %v763
    %v765 = vrot.slane %v749, %v764
    %v766 = vcombine.high %v765, %v765
    %768 = vst [vmem:[#allocation5 + $0x2] sm:$0x3] %v766
    %v769 = vcombine.high %v749, %v749
    %v771 = vunpack.c.l.s4 1983009808
    %v772 = vunpack.c.0.s8 %v771
    %v773 = vlaneseq
    %v774 = vshrl.u32 %v773, 7
    %v775 = vsub.s32 %v772, %v774
    %v776 = vrot.slane %v769, %v775
    %778 = vst [vmem:[#allocation5 + $0x4] sm:$0x3] %v776
    %v779 = vcombine.high %v776, %v776
    %781 = vst [vmem:[#allocation5 + $0x6] sm:$0x3] %v779
    %782 = vst [vmem:[#allocation5 + $0x8] sm:$0x3] %v750
    %v785 = vunpack.c.l.s4 1983009808
    %v786 = vunpack.c.0.s8 %v785
    %v787 = vlaneseq
    %v788 = vshrl.u32 %v787, 7
    %v789 = vsub.s32 %v786, %v788
    %v790 = vrot.slane %v750, %v789
    %v791 = vcombine.high %v790, %v790
    %793 = vst [vmem:[#allocation5 + $0xa] sm:$0x3] %v791
    %v794 = vcombine.high %v750, %v750
    %v796 = vunpack.c.l.s4 1983009808
    %v797 = vunpack.c.0.s8 %v796
    %v798 = vlaneseq
    %v799 = vshrl.u32 %v798, 7
    %v800 = vsub.s32 %v797, %v799
    %v801 = vrot.slane %v794, %v800
    %803 = vst [vmem:[#allocation5 + $0xc] sm:$0x3] %v801
    %v804 = vcombine.high %v801, %v801
    %806 = vst [vmem:[#allocation5 + $0xe] sm:$0x3] %v804
    %807 = vst [vmem:[#allocation5 + $0x10] sm:$0x3] %v751
    %v810 = vunpack.c.l.s4 1983009808
    %v811 = vunpack.c.0.s8 %v810
    %v812 = vlaneseq
    %v813 = vshrl.u32 %v812, 7
    %v814 = vsub.s32 %v811, %v813
    %v815 = vrot.slane %v751, %v814
    %v816 = vcombine.high %v815, %v815
    %818 = vst [vmem:[#allocation5 + $0x12] sm:$0x3] %v816
    %v819 = vcombine.high %v751, %v751
    %v821 = vunpack.c.l.s4 1983009808
    %v822 = vunpack.c.0.s8 %v821
    %v823 = vlaneseq
    %v824 = vshrl.u32 %v823, 7
    %v825 = vsub.s32 %v822, %v824
    %v826 = vrot.slane %v819, %v825
    %828 = vst [vmem:[#allocation5 + $0x14] sm:$0x3] %v826
    %v829 = vcombine.high %v826, %v826
    %831 = vst [vmem:[#allocation5 + $0x16] sm:$0x3] %v829
    %832 = vst [vmem:[#allocation5 + $0x18] sm:$0x3] %v752
    %v835 = vunpack.c.l.s4 1983009808
    %v836 = vunpack.c.0.s8 %v835
    %v837 = vlaneseq
    %v838 = vshrl.u32 %v837, 7
    %v839 = vsub.s32 %v836, %v838
    %v840 = vrot.slane %v752, %v839
    %v841 = vcombine.high %v840, %v840
    %843 = vst [vmem:[#allocation5 + $0x1a] sm:$0x3] %v841
    %v844 = vcombine.high %v752, %v752
    %v846 = vunpack.c.l.s4 1983009808
    %v847 = vunpack.c.0.s8 %v846
    %v848 = vlaneseq
    %v849 = vshrl.u32 %v848, 7
    %v850 = vsub.s32 %v847, %v849
    %v851 = vrot.slane %v844, %v850
    %853 = vst [vmem:[#allocation5 + $0x1c] sm:$0x3] %v851
    %v854 = vcombine.high %v851, %v851
    %856 = vst [vmem:[#allocation5 + $0x1e] sm:$0x3] %v854
    %857 = vst [vmem:[#allocation5 + $0x20] sm:$0x3] %v753
    %v860 = vunpack.c.l.s4 1983009808
    %v861 = vunpack.c.0.s8 %v860
    %v862 = vlaneseq
    %v863 = vshrl.u32 %v862, 7
    %v864 = vsub.s32 %v861, %v863
    %v865 = vrot.slane %v753, %v864
    %v866 = vcombine.high %v865, %v865
    %868 = vst [vmem:[#allocation5 + $0x22] sm:$0x3] %v866
    %v869 = vcombine.high %v753, %v753
    %v871 = vunpack.c.l.s4 1983009808
    %v872 = vunpack.c.0.s8 %v871
    %v873 = vlaneseq
    %v874 = vshrl.u32 %v873, 7
    %v875 = vsub.s32 %v872, %v874
    %v876 = vrot.slane %v869, %v875
    %878 = vst [vmem:[#allocation5 + $0x24] sm:$0x3] %v876
    %v879 = vcombine.high %v876, %v876
    %881 = vst [vmem:[#allocation5 + $0x26] sm:$0x3] %v879
    %882 = vst [vmem:[#allocation5 + $0x28] sm:$0x3] %v754
    %v885 = vunpack.c.l.s4 1983009808
    %v886 = vunpack.c.0.s8 %v885
    %v887 = vlaneseq
    %v888 = vshrl.u32 %v887, 7
    %v889 = vsub.s32 %v886, %v888
    %v890 = vrot.slane %v754, %v889
    %v891 = vcombine.high %v890, %v890
    %893 = vst [vmem:[#allocation5 + $0x2a] sm:$0x3] %v891
    %v894 = vcombine.high %v754, %v754
    %v896 = vunpack.c.l.s4 1983009808
    %v897 = vunpack.c.0.s8 %v896
    %v898 = vlaneseq
    %v899 = vshrl.u32 %v898, 7
    %v900 = vsub.s32 %v897, %v899
    %v901 = vrot.slane %v894, %v900
    %903 = vst [vmem:[#allocation5 + $0x2c] sm:$0x3] %v901
    %v904 = vcombine.high %v901, %v901
    %906 = vst [vmem:[#allocation5 + $0x2e] sm:$0x3] %v904
    %907 = vst [vmem:[#allocation5 + $0x30] sm:$0x3] %v755
    %v910 = vunpack.c.l.s4 1983009808
    %v911 = vunpack.c.0.s8 %v910
    %v912 = vlaneseq
    %v913 = vshrl.u32 %v912, 7
    %v914 = vsub.s32 %v911, %v913
    %v915 = vrot.slane %v755, %v914
    %v916 = vcombine.high %v915, %v915
    %918 = vst [vmem:[#allocation5 + $0x32] sm:$0x3] %v916
    %v919 = vcombine.high %v755, %v755
    %v921 = vunpack.c.l.s4 1983009808
    %v922 = vunpack.c.0.s8 %v921
    %v923 = vlaneseq
    %v924 = vshrl.u32 %v923, 7
    %v925 = vsub.s32 %v922, %v924
    %v926 = vrot.slane %v919, %v925
    %928 = vst [vmem:[#allocation5 + $0x34] sm:$0x3] %v926
    %v929 = vcombine.high %v926, %v926
    %931 = vst [vmem:[#allocation5 + $0x36] sm:$0x3] %v929
    %932 = vst [vmem:[#allocation5 + $0x38] sm:$0x3] %v756
    %v935 = vunpack.c.l.s4 1983009808
    %v936 = vunpack.c.0.s8 %v935
    %v937 = vlaneseq
    %v938 = vshrl.u32 %v937, 7
    %v939 = vsub.s32 %v936, %v938
    %v940 = vrot.slane %v756, %v939
    %v941 = vcombine.high %v940, %v940
    %943 = vst [vmem:[#allocation5 + $0x3a] sm:$0x3] %v941
    %v944 = vcombine.high %v756, %v756
    %v946 = vunpack.c.l.s4 1983009808
    %v947 = vunpack.c.0.s8 %v946
    %v948 = vlaneseq
    %v949 = vshrl.u32 %v948, 7
    %v950 = vsub.s32 %v947, %v949
    %v951 = vrot.slane %v944, %v950
    %953 = vst [vmem:[#allocation5 + $0x3c] sm:$0x3] %v951
    %v954 = vcombine.high %v951, %v951
    %956 = vst [vmem:[#allocation5 + $0x3e] sm:$0x3] %v954
    %v957 = vld [vmem:[%s6] sm:$0x1]
    %s958 = smul.u32 4, 128
    %s959 = smul.u32 %s958, 1
    %s960 = sshll.u32 %s959, 4
    %961 = dma.done [#allocation6], %s960
    %v962 = vld [vmem:[#allocation5] sm:$0xff]
    %v963 = vld [vmem:[#allocation5 + $0x8] sm:$0xff]
    %v966 = vcombine.high %v962, %v962
    %v968 = vunpack.c.l.s4 1983009808
    %v969 = vunpack.c.0.s8 %v968
    %v970 = vlaneseq
    %v971 = vshrl.u32 %v970, 7
    %v972 = vsub.s32 %v969, %v971
    %v973 = vrot.slane %v962, %v972
    %v975 = vunpack.c.l.s4 1983009808
    %v976 = vunpack.c.0.s8 %v975
    %v977 = vlaneseq
    %v978 = vshrl.u32 %v977, 7
    %v979 = vsub.s32 %v976, %v978
    %v980 = vrot.slane %v966, %v979
    %v981 = vcombine.high %v973, %v973
    %v982 = vcombine.high %v980, %v980
    %v983 = vcombine.high %v963, %v963
    %v985 = vunpack.c.l.s4 1983009808
    %v986 = vunpack.c.0.s8 %v985
    %v987 = vlaneseq
    %v988 = vshrl.u32 %v987, 7
    %v989 = vsub.s32 %v986, %v988
    %v990 = vrot.slane %v963, %v989
    %v992 = vunpack.c.l.s4 1983009808
    %v993 = vunpack.c.0.s8 %v992
    %v994 = vlaneseq
    %v995 = vshrl.u32 %v994, 7
    %v996 = vsub.s32 %v993, %v995
    %v997 = vrot.slane %v983, %v996
    %v998 = vcombine.high %v990, %v990
    %v999 = vcombine.high %v997, %v997
    %v1008 = vpack.c.bf16 %v973, %v973
    %v1009 = vpack.c.bf16 %v981, %v981
    %v1010 = vpack.c.bf16 %v980, %v980
    %v1011 = vpack.c.bf16 %v982, %v982
    %v1012 = vpack.c.bf16 %v990, %v990
    %v1013 = vpack.c.bf16 %v998, %v998
    %v1014 = vpack.c.bf16 %v997, %v997
    %v1015 = vpack.c.bf16 %v999, %v999
    %v1016 = vld [vmem:[#allocation2] sm:$0xff]
    %v1017 = vld [vmem:[#allocation2 + $0x8] sm:$0xff]
    %v1018 = vld [vmem:[#allocation2 + $0x10] sm:$0xff]
    %v1019 = vld [vmem:[#allocation2 + $0x18] sm:$0xff]
    %v1020 = vld [vmem:[#allocation2 + $0x20] sm:$0xff]
    %v1021 = vld [vmem:[#allocation2 + $0x28] sm:$0xff]
    %v1022 = vld [vmem:[#allocation2 + $0x30] sm:$0xff]
    %v1023 = vld [vmem:[#allocation2 + $0x38] sm:$0xff]
    %v1024 = vld [vmem:[#allocation2 + $0x40] sm:$0xff]
    %v1025 = vld [vmem:[#allocation2 + $0x48] sm:$0xff]
    %v1026 = vld [vmem:[#allocation2 + $0x50] sm:$0xff]
    %v1027 = vld [vmem:[#allocation2 + $0x58] sm:$0xff]
    %v1028 = vld [vmem:[#allocation2 + $0x60] sm:$0xff]
    %v1029 = vld [vmem:[#allocation2 + $0x68] sm:$0xff]
    %v1030 = vld [vmem:[#allocation2 + $0x70] sm:$0xff]
    %v1031 = vld [vmem:[#allocation2 + $0x78] sm:$0xff]
    %v1032 = vld [vmem:[#allocation2 + $0x80] sm:$0xff]
    %v1033 = vld [vmem:[#allocation2 + $0x88] sm:$0xff]
    %v1034 = vld [vmem:[#allocation2 + $0x90] sm:$0xff]
    %v1035 = vld [vmem:[#allocation2 + $0x98] sm:$0xff]
    %v1036 = vld [vmem:[#allocation2 + $0xa0] sm:$0xff]
    %v1037 = vld [vmem:[#allocation2 + $0xa8] sm:$0xff]
    %v1038 = vld [vmem:[#allocation2 + $0xb0] sm:$0xff]
    %v1039 = vld [vmem:[#allocation2 + $0xb8] sm:$0xff]
    %v1040 = vld [vmem:[#allocation2 + $0xc0] sm:$0xff]
    %v1041 = vld [vmem:[#allocation2 + $0xc8] sm:$0xff]
    %v1042 = vld [vmem:[#allocation2 + $0xd0] sm:$0xff]
    %v1043 = vld [vmem:[#allocation2 + $0xd8] sm:$0xff]
    %v1044 = vld [vmem:[#allocation2 + $0xe0] sm:$0xff]
    %v1045 = vld [vmem:[#allocation2 + $0xe8] sm:$0xff]
    %v1046 = vld [vmem:[#allocation2 + $0xf0] sm:$0xff]
    %v1047 = vld [vmem:[#allocation2 + $0xf8] sm:$0xff]
    %v1048 = vld [vmem:[#allocation2 + $0x100] sm:$0xff]
    %v1049 = vld [vmem:[#allocation2 + $0x108] sm:$0xff]
    %v1050 = vld [vmem:[#allocation2 + $0x110] sm:$0xff]
    %v1051 = vld [vmem:[#allocation2 + $0x118] sm:$0xff]
    %v1052 = vld [vmem:[#allocation2 + $0x120] sm:$0xff]
    %v1053 = vld [vmem:[#allocation2 + $0x128] sm:$0xff]
    %v1054 = vld [vmem:[#allocation2 + $0x130] sm:$0xff]
    %v1055 = vld [vmem:[#allocation2 + $0x138] sm:$0xff]
    %v1056 = vld [vmem:[#allocation2 + $0x140] sm:$0xff]
    %v1057 = vld [vmem:[#allocation2 + $0x148] sm:$0xff]
    %v1058 = vld [vmem:[#allocation2 + $0x150] sm:$0xff]
    %v1059 = vld [vmem:[#allocation2 + $0x158] sm:$0xff]
    %v1060 = vld [vmem:[#allocation2 + $0x160] sm:$0xff]
    %v1061 = vld [vmem:[#allocation2 + $0x168] sm:$0xff]
    %v1062 = vld [vmem:[#allocation2 + $0x170] sm:$0xff]
    %v1063 = vld [vmem:[#allocation2 + $0x178] sm:$0xff]
    %v1064 = vld [vmem:[#allocation2 + $0x180] sm:$0xff]
    %v1065 = vld [vmem:[#allocation2 + $0x188] sm:$0xff]
    %v1066 = vld [vmem:[#allocation2 + $0x190] sm:$0xff]
    %v1067 = vld [vmem:[#allocation2 + $0x198] sm:$0xff]
    %v1068 = vld [vmem:[#allocation2 + $0x1a0] sm:$0xff]
    %v1069 = vld [vmem:[#allocation2 + $0x1a8] sm:$0xff]
    %v1070 = vld [vmem:[#allocation2 + $0x1b0] sm:$0xff]
    %v1071 = vld [vmem:[#allocation2 + $0x1b8] sm:$0xff]
    %v1072 = vld [vmem:[#allocation2 + $0x1c0] sm:$0xff]
    %v1073 = vld [vmem:[#allocation2 + $0x1c8] sm:$0xff]
    %v1074 = vld [vmem:[#allocation2 + $0x1d0] sm:$0xff]
    %v1075 = vld [vmem:[#allocation2 + $0x1d8] sm:$0xff]
    %v1076 = vld [vmem:[#allocation2 + $0x1e0] sm:$0xff]
    %v1077 = vld [vmem:[#allocation2 + $0x1e8] sm:$0xff]
    %v1078 = vld [vmem:[#allocation2 + $0x1f0] sm:$0xff]
    %v1079 = vld [vmem:[#allocation2 + $0x1f8] sm:$0xff]
    %1080 = vmatprep.subr.bf16.mxu0 0
    %1081 = vmatpush1.bf16.msra.mxu0 %v1016
    %1082 = vmatprep.subr.bf16.mxu0 0
    %1083 = vmatpush1.bf16.msra.mxu0 %v1017
    %1084 = vmatprep.subr.bf16.mxu0 0
    %1085 = vmatpush1.bf16.msra.mxu0 %v1018
    %1086 = vmatprep.subr.bf16.mxu0 0
    %1087 = vmatpush1.bf16.msra.mxu0 %v1019
    %1088 = vmatprep.subr.bf16.mxu0 0
    %1089 = vmatpush1.bf16.msra.mxu0 %v1020
    %1090 = vmatprep.subr.bf16.mxu0 0
    %1091 = vmatpush1.bf16.msra.mxu0 %v1021
    %1092 = vmatprep.subr.bf16.mxu0 0
    %1093 = vmatpush1.bf16.msra.mxu0 %v1022
    %1094 = vmatprep.subr.bf16.mxu0 0
    %1095 = vmatpush1.bf16.msra.mxu0 %v1023
    %1096 = vmatprep.subr.bf16.mxu0 0
    %1097 = vmatpush1.bf16.msra.mxu0 %v1024
    %1098 = vmatprep.subr.bf16.mxu0 0
    %1099 = vmatpush1.bf16.msra.mxu0 %v1025
    %1100 = vmatprep.subr.bf16.mxu0 0
    %1101 = vmatpush1.bf16.msra.mxu0 %v1026
    %1102 = vmatprep.subr.bf16.mxu0 0
    %1103 = vmatpush1.bf16.msra.mxu0 %v1027
    %1104 = vmatprep.subr.bf16.mxu0 0
    %1105 = vmatpush1.bf16.msra.mxu0 %v1028
    %1106 = vmatprep.subr.bf16.mxu0 0
    %1107 = vmatpush1.bf16.msra.mxu0 %v1029
    %1108 = vmatprep.subr.bf16.mxu0 0
    %1109 = vmatpush1.bf16.msra.mxu0 %v1030
    %1110 = vmatprep.subr.bf16.mxu0 0
    %1111 = vmatpush1.bf16.msra.mxu0 %v1031
    %1112 = vmatprep.mubr.bf16.mxu0 %v1009
    %1113 = vmatmul.mubr.bf16.gmra.mrb[0].mxu0 %v1008
    %v1114 = vpop.f32.mrb[0].mxu0
    %v1115 = vadd.f32 0.0, %v1114
    %v1116 = vpop.f32.mrb[0].mxu0
    %v1117 = vpop.f32.mrb[0].mxu0
    %v1118 = vpop.f32.mrb[0].mxu0
    %1119 = vdwg.mxu0
    %1120 = vmatprep.subr.bf16.mxu0 0
    %1121 = vmatpush1.bf16.msra.mxu0 %v1032
    %1122 = vmatprep.subr.bf16.mxu0 0
    %1123 = vmatpush1.bf16.msra.mxu0 %v1033
    %1124 = vmatprep.subr.bf16.mxu0 0
    %1125 = vmatpush1.bf16.msra.mxu0 %v1034
    %1126 = vmatprep.subr.bf16.mxu0 0
    %1127 = vmatpush1.bf16.msra.mxu0 %v1035
    %1128 = vmatprep.subr.bf16.mxu0 0
    %1129 = vmatpush1.bf16.msra.mxu0 %v1036
    %1130 = vmatprep.subr.bf16.mxu0 0
    %1131 = vmatpush1.bf16.msra.mxu0 %v1037
    %1132 = vmatprep.subr.bf16.mxu0 0
    %1133 = vmatpush1.bf16.msra.mxu0 %v1038
    %1134 = vmatprep.subr.bf16.mxu0 0
    %1135 = vmatpush1.bf16.msra.mxu0 %v1039
    %1136 = vmatprep.subr.bf16.mxu0 0
    %1137 = vmatpush1.bf16.msra.mxu0 %v1040
    %1138 = vmatprep.subr.bf16.mxu0 0
    %1139 = vmatpush1.bf16.msra.mxu0 %v1041
    %1140 = vmatprep.subr.bf16.mxu0 0
    %1141 = vmatpush1.bf16.msra.mxu0 %v1042
    %1142 = vmatprep.subr.bf16.mxu0 0
    %1143 = vmatpush1.bf16.msra.mxu0 %v1043
    %1144 = vmatprep.subr.bf16.mxu0 0
    %1145 = vmatpush1.bf16.msra.mxu0 %v1044
    %1146 = vmatprep.subr.bf16.mxu0 0
    %1147 = vmatpush1.bf16.msra.mxu0 %v1045
    %1148 = vmatprep.subr.bf16.mxu0 0
    %1149 = vmatpush1.bf16.msra.mxu0 %v1046
    %1150 = vmatprep.subr.bf16.mxu0 0
    %1151 = vmatpush1.bf16.msra.mxu0 %v1047
    %1152 = vmatprep.mubr.bf16.mxu0 %v1011
    %1153 = vmatmul.mubr.bf16.gmra.mrb[0].mxu0 %v1010
    %v1154 = vpop.f32.mrb[0].mxu0
    %v1155 = vadd.f32 %v1115, %v1154
    %v1156 = vpop.f32.mrb[0].mxu0
    %v1157 = vpop.f32.mrb[0].mxu0
    %v1158 = vpop.f32.mrb[0].mxu0
    %1159 = vdwg.mxu0
    %1160 = vmatprep.subr.bf16.mxu0 0
    %1161 = vmatpush1.bf16.msra.mxu0 %v1048
    %1162 = vmatprep.subr.bf16.mxu0 0
    %1163 = vmatpush1.bf16.msra.mxu0 %v1049
    %1164 = vmatprep.subr.bf16.mxu0 0
    %1165 = vmatpush1.bf16.msra.mxu0 %v1050
    %1166 = vmatprep.subr.bf16.mxu0 0
    %1167 = vmatpush1.bf16.msra.mxu0 %v1051
    %1168 = vmatprep.subr.bf16.mxu0 0
    %1169 = vmatpush1.bf16.msra.mxu0 %v1052
    %1170 = vmatprep.subr.bf16.mxu0 0
    %1171 = vmatpush1.bf16.msra.mxu0 %v1053
    %1172 = vmatprep.subr.bf16.mxu0 0
    %1173 = vmatpush1.bf16.msra.mxu0 %v1054
    %1174 = vmatprep.subr.bf16.mxu0 0
    %1175 = vmatpush1.bf16.msra.mxu0 %v1055
    %1176 = vmatprep.subr.bf16.mxu0 0
    %1177 = vmatpush1.bf16.msra.mxu0 %v1056
    %1178 = vmatprep.subr.bf16.mxu0 0
    %1179 = vmatpush1.bf16.msra.mxu0 %v1057
    %1180 = vmatprep.subr.bf16.mxu0 0
    %1181 = vmatpush1.bf16.msra.mxu0 %v1058
    %1182 = vmatprep.subr.bf16.mxu0 0
    %1183 = vmatpush1.bf16.msra.mxu0 %v1059
    %1184 = vmatprep.subr.bf16.mxu0 0
    %1185 = vmatpush1.bf16.msra.mxu0 %v1060
    %1186 = vmatprep.subr.bf16.mxu0 0
    %1187 = vmatpush1.bf16.msra.mxu0 %v1061
    %1188 = vmatprep.subr.bf16.mxu0 0
    %1189 = vmatpush1.bf16.msra.mxu0 %v1062
    %1190 = vmatprep.subr.bf16.mxu0 0
    %1191 = vmatpush1.bf16.msra.mxu0 %v1063
    %1192 = vmatprep.mubr.bf16.mxu0 %v1013
    %1193 = vmatmul.mubr.bf16.gmra.mrb[0].mxu0 %v1012
    %v1194 = vpop.f32.mrb[0].mxu0
    %v1195 = vadd.f32 %v1155, %v1194
    %v1196 = vpop.f32.mrb[0].mxu0
    %v1197 = vpop.f32.mrb[0].mxu0
    %v1198 = vpop.f32.mrb[0].mxu0
    %1199 = vdwg.mxu0
    %1200 = vmatprep.subr.bf16.mxu0 0
    %1201 = vmatpush1.bf16.msra.mxu0 %v1064
    %1202 = vmatprep.subr.bf16.mxu0 0
    %1203 = vmatpush1.bf16.msra.mxu0 %v1065
    %1204 = vmatprep.subr.bf16.mxu0 0
    %1205 = vmatpush1.bf16.msra.mxu0 %v1066
    %1206 = vmatprep.subr.bf16.mxu0 0
    %1207 = vmatpush1.bf16.msra.mxu0 %v1067
    %1208 = vmatprep.subr.bf16.mxu0 0
    %1209 = vmatpush1.bf16.msra.mxu0 %v1068
    %1210 = vmatprep.subr.bf16.mxu0 0
    %1211 = vmatpush1.bf16.msra.mxu0 %v1069
    %1212 = vmatprep.subr.bf16.mxu0 0
    %1213 = vmatpush1.bf16.msra.mxu0 %v1070
    %1214 = vmatprep.subr.bf16.mxu0 0
    %1215 = vmatpush1.bf16.msra.mxu0 %v1071
    %1216 = vmatprep.subr.bf16.mxu0 0
    %1217 = vmatpush1.bf16.msra.mxu0 %v1072
    %1218 = vmatprep.subr.bf16.mxu0 0
    %1219 = vmatpush1.bf16.msra.mxu0 %v1073
    %1220 = vmatprep.subr.bf16.mxu0 0
    %1221 = vmatpush1.bf16.msra.mxu0 %v1074
    %1222 = vmatprep.subr.bf16.mxu0 0
    %1223 = vmatpush1.bf16.msra.mxu0 %v1075
    %1224 = vmatprep.subr.bf16.mxu0 0
    %1225 = vmatpush1.bf16.msra.mxu0 %v1076
    %1226 = vmatprep.subr.bf16.mxu0 0
    %1227 = vmatpush1.bf16.msra.mxu0 %v1077
    %1228 = vmatprep.subr.bf16.mxu0 0
    %1229 = vmatpush1.bf16.msra.mxu0 %v1078
    %1230 = vmatprep.subr.bf16.mxu0 0
    %1231 = vmatpush1.bf16.msra.mxu0 %v1079
    %1232 = vmatprep.mubr.bf16.mxu0 %v1015
    %1233 = vmatmul.mubr.bf16.gmra.mrb[0].mxu0 %v1014
    %v1234 = vpop.f32.mrb[0].mxu0
    %v1235 = vadd.f32 %v1195, %v1234
    %v1236 = vpop.f32.mrb[0].mxu0
    %v1237 = vpop.f32.mrb[0].mxu0
    %v1238 = vpop.f32.mrb[0].mxu0
    %1239 = vdwg.mxu0
    %v1241 = vlaneseq
    %v1242 = vshrl.u32 %v1241, 7
    %v1243 = vsub.s32 0, %v1242
    %v1244 = vrot.slane %v957, %v1243
    %v1246 = vadd.f32 %v1244, %v1235
    %s1247 = sshll.u32 %s959, 4
    %1248 = dma.done %s42, %s1247
    %v1249 = vld [vmem:[#allocation5 + $0x10] sm:$0xff]
    %v1250 = vld [vmem:[#allocation5 + $0x18] sm:$0xff]
    %v1253 = vcombine.high %v1249, %v1249
    %v1255 = vunpack.c.l.s4 1983009808
    %v1256 = vunpack.c.0.s8 %v1255
    %v1257 = vlaneseq
    %v1258 = vshrl.u32 %v1257, 7
    %v1259 = vsub.s32 %v1256, %v1258
    %v1260 = vrot.slane %v1249, %v1259
    %v1262 = vunpack.c.l.s4 1983009808
    %v1263 = vunpack.c.0.s8 %v1262
    %v1264 = vlaneseq
    %v1265 = vshrl.u32 %v1264, 7
    %v1266 = vsub.s32 %v1263, %v1265
    %v1267 = vrot.slane %v1253, %v1266
    %v1268 = vcombine.high %v1260, %v1260
    %v1269 = vcombine.high %v1267, %v1267
    %v1270 = vcombine.high %v1250, %v1250
    %v1272 = vunpack.c.l.s4 1983009808
    %v1273 = vunpack.c.0.s8 %v1272
    %v1274 = vlaneseq
    %v1275 = vshrl.u32 %v1274, 7
    %v1276 = vsub.s32 %v1273, %v1275
    %v1277 = vrot.slane %v1250, %v1276
    %v1279 = vunpack.c.l.s4 1983009808
    %v1280 = vunpack.c.0.s8 %v1279
    %v1281 = vlaneseq
    %v1282 = vshrl.u32 %v1281, 7
    %v1283 = vsub.s32 %v1280, %v1282
    %v1284 = vrot.slane %v1270, %v1283
    %v1285 = vcombine.high %v1277, %v1277
    %v1286 = vcombine.high %v1284, %v1284
    %v1295 = vpack.c.bf16 %v1260, %v1260
    %v1296 = vpack.c.bf16 %v1268, %v1268
    %v1297 = vpack.c.bf16 %v1267, %v1267
    %v1298 = vpack.c.bf16 %v1269, %v1269
    %v1299 = vpack.c.bf16 %v1277, %v1277
    %v1300 = vpack.c.bf16 %v1285, %v1285
    %v1301 = vpack.c.bf16 %v1284, %v1284
    %v1302 = vpack.c.bf16 %v1286, %v1286
    %v1303 = vld [vmem:[%s41] sm:$0xff]
    %v1304 = vld [vmem:[%s41 + $0x8] sm:$0xff]
    %v1305 = vld [vmem:[%s41 + $0x10] sm:$0xff]
    %v1306 = vld [vmem:[%s41 + $0x18] sm:$0xff]
    %v1307 = vld [vmem:[%s41 + $0x20] sm:$0xff]
    %v1308 = vld [vmem:[%s41 + $0x28] sm:$0xff]
    %v1309 = vld [vmem:[%s41 + $0x30] sm:$0xff]
    %v1310 = vld [vmem:[%s41 + $0x38] sm:$0xff]
    %v1311 = vld [vmem:[%s41 + $0x40] sm:$0xff]
    %v1312 = vld [vmem:[%s41 + $0x48] sm:$0xff]
    %v1313 = vld [vmem:[%s41 + $0x50] sm:$0xff]
    %v1314 = vld [vmem:[%s41 + $0x58] sm:$0xff]
    %v1315 = vld [vmem:[%s41 + $0x60] sm:$0xff]
    %v1316 = vld [vmem:[%s41 + $0x68] sm:$0xff]
    %v1317 = vld [vmem:[%s41 + $0x70] sm:$0xff]
    %v1318 = vld [vmem:[%s41 + $0x78] sm:$0xff]
    %v1319 = vld [vmem:[%s41 + $0x80] sm:$0xff]
    %v1320 = vld [vmem:[%s41 + $0x88] sm:$0xff]
    %v1321 = vld [vmem:[%s41 + $0x90] sm:$0xff]
    %v1322 = vld [vmem:[%s41 + $0x98] sm:$0xff]
    %v1323 = vld [vmem:[%s41 + $0xa0] sm:$0xff]
    %v1324 = vld [vmem:[%s41 + $0xa8] sm:$0xff]
    %v1325 = vld [vmem:[%s41 + $0xb0] sm:$0xff]
    %v1326 = vld [vmem:[%s41 + $0xb8] sm:$0xff]
    %v1327 = vld [vmem:[%s41 + $0xc0] sm:$0xff]
    %v1328 = vld [vmem:[%s41 + $0xc8] sm:$0xff]
    %v1329 = vld [vmem:[%s41 + $0xd0] sm:$0xff]
    %v1330 = vld [vmem:[%s41 + $0xd8] sm:$0xff]
    %v1331 = vld [vmem:[%s41 + $0xe0] sm:$0xff]
    %v1332 = vld [vmem:[%s41 + $0xe8] sm:$0xff]
    %v1333 = vld [vmem:[%s41 + $0xf0] sm:$0xff]
    %v1334 = vld [vmem:[%s41 + $0xf8] sm:$0xff]
    %v1335 = vld [vmem:[%s41 + $0x100] sm:$0xff]
    %v1336 = vld [vmem:[%s41 + $0x108] sm:$0xff]
    %v1337 = vld [vmem:[%s41 + $0x110] sm:$0xff]
    %v1338 = vld [vmem:[%s41 + $0x118] sm:$0xff]
    %v1339 = vld [vmem:[%s41 + $0x120] sm:$0xff]
    %v1340 = vld [vmem:[%s41 + $0x128] sm:$0xff]
    %v1341 = vld [vmem:[%s41 + $0x130] sm:$0xff]
    %v1342 = vld [vmem:[%s41 + $0x138] sm:$0xff]
    %v1343 = vld [vmem:[%s41 + $0x140] sm:$0xff]
    %v1344 = vld [vmem:[%s41 + $0x148] sm:$0xff]
    %v1345 = vld [vmem:[%s41 + $0x150] sm:$0xff]
    %v1346 = vld [vmem:[%s41 + $0x158] sm:$0xff]
    %v1347 = vld [vmem:[%s41 + $0x160] sm:$0xff]
    %v1348 = vld [vmem:[%s41 + $0x168] sm:$0xff]
    %v1349 = vld [vmem:[%s41 + $0x170] sm:$0xff]
    %v1350 = vld [vmem:[%s41 + $0x178] sm:$0xff]
    %v1351 = vld [vmem:[%s41 + $0x180] sm:$0xff]
    %v1352 = vld [vmem:[%s41 + $0x188] sm:$0xff]
    %v1353 = vld [vmem:[%s41 + $0x190] sm:$0xff]
    %v1354 = vld [vmem:[%s41 + $0x198] sm:$0xff]
    %v1355 = vld [vmem:[%s41 + $0x1a0] sm:$0xff]
    %v1356 = vld [vmem:[%s41 + $0x1a8] sm:$0xff]
    %v1357 = vld [vmem:[%s41 + $0x1b0] sm:$0xff]
    %v1358 = vld [vmem:[%s41 + $0x1b8] sm:$0xff]
    %v1359 = vld [vmem:[%s41 + $0x1c0] sm:$0xff]
    %v1360 = vld [vmem:[%s41 + $0x1c8] sm:$0xff]
    %v1361 = vld [vmem:[%s41 + $0x1d0] sm:$0xff]
    %v1362 = vld [vmem:[%s41 + $0x1d8] sm:$0xff]
    %v1363 = vld [vmem:[%s41 + $0x1e0] sm:$0xff]
    %v1364 = vld [vmem:[%s41 + $0x1e8] sm:$0xff]
    %v1365 = vld [vmem:[%s41 + $0x1f0] sm:$0xff]
    %v1366 = vld [vmem:[%s41 + $0x1f8] sm:$0xff]
    %1367 = vmatprep.subr.bf16.mxu0 0
    %1368 = vmatpush1.bf16.msra.mxu0 %v1303
    %1369 = vmatprep.subr.bf16.mxu0 0
    %1370 = vmatpush1.bf16.msra.mxu0 %v1304
    %1371 = vmatprep.subr.bf16.mxu0 0
    %1372 = vmatpush1.bf16.msra.mxu0 %v1305
    %1373 = vmatprep.subr.bf16.mxu0 0
    %1374 = vmatpush1.bf16.msra.mxu0 %v1306
    %1375 = vmatprep.subr.bf16.mxu0 0
    %1376 = vmatpush1.bf16.msra.mxu0 %v1307
    %1377 = vmatprep.subr.bf16.mxu0 0
    %1378 = vmatpush1.bf16.msra.mxu0 %v1308
    %1379 = vmatprep.subr.bf16.mxu0 0
    %1380 = vmatpush1.bf16.msra.mxu0 %v1309
    %1381 = vmatprep.subr.bf16.mxu0 0
    %1382 = vmatpush1.bf16.msra.mxu0 %v1310
    %1383 = vmatprep.subr.bf16.mxu0 0
    %1384 = vmatpush1.bf16.msra.mxu0 %v1311
    %1385 = vmatprep.subr.bf16.mxu0 0
    %1386 = vmatpush1.bf16.msra.mxu0 %v1312
    %1387 = vmatprep.subr.bf16.mxu0 0
    %1388 = vmatpush1.bf16.msra.mxu0 %v1313
    %1389 = vmatprep.subr.bf16.mxu0 0
    %1390 = vmatpush1.bf16.msra.mxu0 %v1314
    %1391 = vmatprep.subr.bf16.mxu0 0
    %1392 = vmatpush1.bf16.msra.mxu0 %v1315
    %1393 = vmatprep.subr.bf16.mxu0 0
    %1394 = vmatpush1.bf16.msra.mxu0 %v1316
    %1395 = vmatprep.subr.bf16.mxu0 0
    %1396 = vmatpush1.bf16.msra.mxu0 %v1317
    %1397 = vmatprep.subr.bf16.mxu0 0
    %1398 = vmatpush1.bf16.msra.mxu0 %v1318
    %1399 = vmatprep.mubr.bf16.mxu0 %v1296
    %1400 = vmatmul.mubr.bf16.gmra.mrb[0].mxu0 %v1295
    %v1401 = vpop.f32.mrb[0].mxu0
    %v1402 = vadd.f32 0.0, %v1401
    %v1403 = vpop.f32.mrb[0].mxu0
    %v1404 = vpop.f32.mrb[0].mxu0
    %v1405 = vpop.f32.mrb[0].mxu0
    %1406 = vdwg.mxu0
    %1407 = vmatprep.subr.bf16.mxu0 0
    %1408 = vmatpush1.bf16.msra.mxu0 %v1319
    %1409 = vmatprep.subr.bf16.mxu0 0
    %1410 = vmatpush1.bf16.msra.mxu0 %v1320
    %1411 = vmatprep.subr.bf16.mxu0 0
    %1412 = vmatpush1.bf16.msra.mxu0 %v1321
    %1413 = vmatprep.subr.bf16.mxu0 0
    %1414 = vmatpush1.bf16.msra.mxu0 %v1322
    %1415 = vmatprep.subr.bf16.mxu0 0
    %1416 = vmatpush1.bf16.msra.mxu0 %v1323
    %1417 = vmatprep.subr.bf16.mxu0 0
    %1418 = vmatpush1.bf16.msra.mxu0 %v1324
    %1419 = vmatprep.subr.bf16.mxu0 0
    %1420 = vmatpush1.bf16.msra.mxu0 %v1325
    %1421 = vmatprep.subr.bf16.mxu0 0
    %1422 = vmatpush1.bf16.msra.mxu0 %v1326
    %1423 = vmatprep.subr.bf16.mxu0 0
    %1424 = vmatpush1.bf16.msra.mxu0 %v1327
    %1425 = vmatprep.subr.bf16.mxu0 0
    %1426 = vmatpush1.bf16.msra.mxu0 %v1328
    %1427 = vmatprep.subr.bf16.mxu0 0
    %1428 = vmatpush1.bf16.msra.mxu0 %v1329
    %1429 = vmatprep.subr.bf16.mxu0 0
    %1430 = vmatpush1.bf16.msra.mxu0 %v1330
    %1431 = vmatprep.subr.bf16.mxu0 0
    %1432 = vmatpush1.bf16.msra.mxu0 %v1331
    %1433 = vmatprep.subr.bf16.mxu0 0
    %1434 = vmatpush1.bf16.msra.mxu0 %v1332
    %1435 = vmatprep.subr.bf16.mxu0 0
    %1436 = vmatpush1.bf16.msra.mxu0 %v1333
    %1437 = vmatprep.subr.bf16.mxu0 0
    %1438 = vmatpush1.bf16.msra.mxu0 %v1334
    %1439 = vmatprep.mubr.bf16.mxu0 %v1298
    %1440 = vmatmul.mubr.bf16.gmra.mrb[0].mxu0 %v1297
    %v1441 = vpop.f32.mrb[0].mxu0
    %v1442 = vadd.f32 %v1402, %v1441
    %v1443 = vpop.f32.mrb[0].mxu0
    %v1444 = vpop.f32.mrb[0].mxu0
    %v1445 = vpop.f32.mrb[0].mxu0
    %1446 = vdwg.mxu0
    %1447 = vmatprep.subr.bf16.mxu0 0
    %1448 = vmatpush1.bf16.msra.mxu0 %v1335
    %1449 = vmatprep.subr.bf16.mxu0 0
    %1450 = vmatpush1.bf16.msra.mxu0 %v1336
    %1451 = vmatprep.subr.bf16.mxu0 0
    %1452 = vmatpush1.bf16.msra.mxu0 %v1337
    %1453 = vmatprep.subr.bf16.mxu0 0
    %1454 = vmatpush1.bf16.msra.mxu0 %v1338
    %1455 = vmatprep.subr.bf16.mxu0 0
    %1456 = vmatpush1.bf16.msra.mxu0 %v1339
    %1457 = vmatprep.subr.bf16.mxu0 0
    %1458 = vmatpush1.bf16.msra.mxu0 %v1340
    %1459 = vmatprep.subr.bf16.mxu0 0
    %1460 = vmatpush1.bf16.msra.mxu0 %v1341
    %1461 = vmatprep.subr.bf16.mxu0 0
    %1462 = vmatpush1.bf16.msra.mxu0 %v1342
    %1463 = vmatprep.subr.bf16.mxu0 0
    %1464 = vmatpush1.bf16.msra.mxu0 %v1343
    %1465 = vmatprep.subr.bf16.mxu0 0
    %1466 = vmatpush1.bf16.msra.mxu0 %v1344
    %1467 = vmatprep.subr.bf16.mxu0 0
    %1468 = vmatpush1.bf16.msra.mxu0 %v1345
    %1469 = vmatprep.subr.bf16.mxu0 0
    %1470 = vmatpush1.bf16.msra.mxu0 %v1346
    %1471 = vmatprep.subr.bf16.mxu0 0
    %1472 = vmatpush1.bf16.msra.mxu0 %v1347
    %1473 = vmatprep.subr.bf16.mxu0 0
    %1474 = vmatpush1.bf16.msra.mxu0 %v1348
    %1475 = vmatprep.subr.bf16.mxu0 0
    %1476 = vmatpush1.bf16.msra.mxu0 %v1349
    %1477 = vmatprep.subr.bf16.mxu0 0
    %1478 = vmatpush1.bf16.msra.mxu0 %v1350
    %1479 = vmatprep.mubr.bf16.mxu0 %v1300
    %1480 = vmatmul.mubr.bf16.gmra.mrb[0].mxu0 %v1299
    %v1481 = vpop.f32.mrb[0].mxu0
    %v1482 = vadd.f32 %v1442, %v1481
    %v1483 = vpop.f32.mrb[0].mxu0
    %v1484 = vpop.f32.mrb[0].mxu0
    %v1485 = vpop.f32.mrb[0].mxu0
    %1486 = vdwg.mxu0
    %1487 = vmatprep.subr.bf16.mxu0 0
    %1488 = vmatpush1.bf16.msra.mxu0 %v1351
    %1489 = vmatprep.subr.bf16.mxu0 0
    %1490 = vmatpush1.bf16.msra.mxu0 %v1352
    %1491 = vmatprep.subr.bf16.mxu0 0
    %1492 = vmatpush1.bf16.msra.mxu0 %v1353
    %1493 = vmatprep.subr.bf16.mxu0 0
    %1494 = vmatpush1.bf16.msra.mxu0 %v1354
    %1495 = vmatprep.subr.bf16.mxu0 0
    %1496 = vmatpush1.bf16.msra.mxu0 %v1355
    %1497 = vmatprep.subr.bf16.mxu0 0
    %1498 = vmatpush1.bf16.msra.mxu0 %v1356
    %1499 = vmatprep.subr.bf16.mxu0 0
    %1500 = vmatpush1.bf16.msra.mxu0 %v1357
    %1501 = vmatprep.subr.bf16.mxu0 0
    %1502 = vmatpush1.bf16.msra.mxu0 %v1358
    %1503 = vmatprep.subr.bf16.mxu0 0
    %1504 = vmatpush1.bf16.msra.mxu0 %v1359
    %1505 = vmatprep.subr.bf16.mxu0 0
    %1506 = vmatpush1.bf16.msra.mxu0 %v1360
    %1507 = vmatprep.subr.bf16.mxu0 0
    %1508 = vmatpush1.bf16.msra.mxu0 %v1361
    %1509 = vmatprep.subr.bf16.mxu0 0
    %1510 = vmatpush1.bf16.msra.mxu0 %v1362
    %1511 = vmatprep.subr.bf16.mxu0 0
    %1512 = vmatpush1.bf16.msra.mxu0 %v1363
    %1513 = vmatprep.subr.bf16.mxu0 0
    %1514 = vmatpush1.bf16.msra.mxu0 %v1364
    %1515 = vmatprep.subr.bf16.mxu0 0
    %1516 = vmatpush1.bf16.msra.mxu0 %v1365
    %1517 = vmatprep.subr.bf16.mxu0 0
    %1518 = vmatpush1.bf16.msra.mxu0 %v1366
    %1519 = vmatprep.mubr.bf16.mxu0 %v1302
    %1520 = vmatmul.mubr.bf16.gmra.mrb[0].mxu0 %v1301
    %v1521 = vpop.f32.mrb[0].mxu0
    %v1522 = vadd.f32 %v1482, %v1521
    %v1523 = vpop.f32.mrb[0].mxu0
    %v1524 = vpop.f32.mrb[0].mxu0
    %v1525 = vpop.f32.mrb[0].mxu0
    %1526 = vdwg.mxu0
    %v1527 = vadd.f32 %v1246, %v1522
    %s1528 = sshll.u32 %s959, 4
    %1529 = dma.done %s56, %s1528
    %v1530 = vld [vmem:[#allocation5 + $0x20] sm:$0xff]
    %v1531 = vld [vmem:[#allocation5 + $0x28] sm:$0xff]
    %v1534 = vcombine.high %v1530, %v1530
    %v1536 = vunpack.c.l.s4 1983009808
    %v1537 = vunpack.c.0.s8 %v1536
    %v1538 = vlaneseq
    %v1539 = vshrl.u32 %v1538, 7
    %v1540 = vsub.s32 %v1537, %v1539
    %v1541 = vrot.slane %v1530, %v1540
    %v1543 = vunpack.c.l.s4 1983009808
    %v1544 = vunpack.c.0.s8 %v1543
    %v1545 = vlaneseq
    %v1546 = vshrl.u32 %v1545, 7
    %v1547 = vsub.s32 %v1544, %v1546
    %v1548 = vrot.slane %v1534, %v1547
    %v1549 = vcombine.high %v1541, %v1541
    %v1550 = vcombine.high %v1548, %v1548
    %v1551 = vcombine.high %v1531, %v1531
    %v1553 = vunpack.c.l.s4 1983009808
    %v1554 = vunpack.c.0.s8 %v1553
    %v1555 = vlaneseq
    %v1556 = vshrl.u32 %v1555, 7
    %v1557 = vsub.s32 %v1554, %v1556
    %v1558 = vrot.slane %v1531, %v1557
    %v1560 = vunpack.c.l.s4 1983009808
    %v1561 = vunpack.c.0.s8 %v1560
    %v1562 = vlaneseq
    %v1563 = vshrl.u32 %v1562, 7
    %v1564 = vsub.s32 %v1561, %v1563
    %v1565 = vrot.slane %v1551, %v1564
    %v1566 = vcombine.high %v1558, %v1558
    %v1567 = vcombine.high %v1565, %v1565
    %v1576 = vpack.c.bf16 %v1541, %v1541
    %v1577 = vpack.c.bf16 %v1549, %v1549
    %v1578 = vpack.c.bf16 %v1548, %v1548
    %v1579 = vpack.c.bf16 %v1550, %v1550
    %v1580 = vpack.c.bf16 %v1558, %v1558
    %v1581 = vpack.c.bf16 %v1566, %v1566
    %v1582 = vpack.c.bf16 %v1565, %v1565
    %v1583 = vpack.c.bf16 %v1567, %v1567
    %v1584 = vld [vmem:[%s55] sm:$0xff]
    %v1585 = vld [vmem:[%s55 + $0x8] sm:$0xff]
    %v1586 = vld [vmem:[%s55 + $0x10] sm:$0xff]
    %v1587 = vld [vmem:[%s55 + $0x18] sm:$0xff]
    %v1588 = vld [vmem:[%s55 + $0x20] sm:$0xff]
    %v1589 = vld [vmem:[%s55 + $0x28] sm:$0xff]
    %v1590 = vld [vmem:[%s55 + $0x30] sm:$0xff]
    %v1591 = vld [vmem:[%s55 + $0x38] sm:$0xff]
    %v1592 = vld [vmem:[%s55 + $0x40] sm:$0xff]
    %v1593 = vld [vmem:[%s55 + $0x48] sm:$0xff]
    %v1594 = vld [vmem:[%s55 + $0x50] sm:$0xff]
    %v1595 = vld [vmem:[%s55 + $0x58] sm:$0xff]
    %v1596 = vld [vmem:[%s55 + $0x60] sm:$0xff]
    %v1597 = vld [vmem:[%s55 + $0x68] sm:$0xff]
    %v1598 = vld [vmem:[%s55 + $0x70] sm:$0xff]
    %v1599 = vld [vmem:[%s55 + $0x78] sm:$0xff]
    %v1600 = vld [vmem:[%s55 + $0x80] sm:$0xff]
    %v1601 = vld [vmem:[%s55 + $0x88] sm:$0xff]
    %v1602 = vld [vmem:[%s55 + $0x90] sm:$0xff]
    %v1603 = vld [vmem:[%s55 + $0x98] sm:$0xff]
    %v1604 = vld [vmem:[%s55 + $0xa0] sm:$0xff]
    %v1605 = vld [vmem:[%s55 + $0xa8] sm:$0xff]
    %v1606 = vld [vmem:[%s55 + $0xb0] sm:$0xff]
    %v1607 = vld [vmem:[%s55 + $0xb8] sm:$0xff]
    %v1608 = vld [vmem:[%s55 + $0xc0] sm:$0xff]
    %v1609 = vld [vmem:[%s55 + $0xc8] sm:$0xff]
    %v1610 = vld [vmem:[%s55 + $0xd0] sm:$0xff]
    %v1611 = vld [vmem:[%s55 + $0xd8] sm:$0xff]
    %v1612 = vld [vmem:[%s55 + $0xe0] sm:$0xff]
    %v1613 = vld [vmem:[%s55 + $0xe8] sm:$0xff]
    %v1614 = vld [vmem:[%s55 + $0xf0] sm:$0xff]
    %v1615 = vld [vmem:[%s55 + $0xf8] sm:$0xff]
    %v1616 = vld [vmem:[%s55 + $0x100] sm:$0xff]
    %v1617 = vld [vmem:[%s55 + $0x108] sm:$0xff]
    %v1618 = vld [vmem:[%s55 + $0x110] sm:$0xff]
    %v1619 = vld [vmem:[%s55 + $0x118] sm:$0xff]
    %v1620 = vld [vmem:[%s55 + $0x120] sm:$0xff]
    %v1621 = vld [vmem:[%s55 + $0x128] sm:$0xff]
    %v1622 = vld [vmem:[%s55 + $0x130] sm:$0xff]
    %v1623 = vld [vmem:[%s55 + $0x138] sm:$0xff]
    %v1624 = vld [vmem:[%s55 + $0x140] sm:$0xff]
    %v1625 = vld [vmem:[%s55 + $0x148] sm:$0xff]
    %v1626 = vld [vmem:[%s55 + $0x150] sm:$0xff]
    %v1627 = vld [vmem:[%s55 + $0x158] sm:$0xff]
    %v1628 = vld [vmem:[%s55 + $0x160] sm:$0xff]
    %v1629 = vld [vmem:[%s55 + $0x168] sm:$0xff]
    %v1630 = vld [vmem:[%s55 + $0x170] sm:$0xff]
    %v1631 = vld [vmem:[%s55 + $0x178] sm:$0xff]
    %v1632 = vld [vmem:[%s55 + $0x180] sm:$0xff]
    %v1633 = vld [vmem:[%s55 + $0x188] sm:$0xff]
    %v1634 = vld [vmem:[%s55 + $0x190] sm:$0xff]
    %v1635 = vld [vmem:[%s55 + $0x198] sm:$0xff]
    %v1636 = vld [vmem:[%s55 + $0x1a0] sm:$0xff]
    %v1637 = vld [vmem:[%s55 + $0x1a8] sm:$0xff]
    %v1638 = vld [vmem:[%s55 + $0x1b0] sm:$0xff]
    %v1639 = vld [vmem:[%s55 + $0x1b8] sm:$0xff]
    %v1640 = vld [vmem:[%s55 + $0x1c0] sm:$0xff]
    %v1641 = vld [vmem:[%s55 + $0x1c8] sm:$0xff]
    %v1642 = vld [vmem:[%s55 + $0x1d0] sm:$0xff]
    %v1643 = vld [vmem:[%s55 + $0x1d8] sm:$0xff]
    %v1644 = vld [vmem:[%s55 + $0x1e0] sm:$0xff]
    %v1645 = vld [vmem:[%s55 + $0x1e8] sm:$0xff]
    %v1646 = vld [vmem:[%s55 + $0x1f0] sm:$0xff]
    %v1647 = vld [vmem:[%s55 + $0x1f8] sm:$0xff]
    %1648 = vmatprep.subr.bf16.mxu0 0
    %1649 = vmatpush1.bf16.msra.mxu0 %v1584
    %1650 = vmatprep.subr.bf16.mxu0 0
    %1651 = vmatpush1.bf16.msra.mxu0 %v1585
    %1652 = vmatprep.subr.bf16.mxu0 0
    %1653 = vmatpush1.bf16.msra.mxu0 %v1586
    %1654 = vmatprep.subr.bf16.mxu0 0
    %1655 = vmatpush1.bf16.msra.mxu0 %v1587
    %1656 = vmatprep.subr.bf16.mxu0 0
    %1657 = vmatpush1.bf16.msra.mxu0 %v1588
    %1658 = vmatprep.subr.bf16.mxu0 0
    %1659 = vmatpush1.bf16.msra.mxu0 %v1589
    %1660 = vmatprep.subr.bf16.mxu0 0
    %1661 = vmatpush1.bf16.msra.mxu0 %v1590
    %1662 = vmatprep.subr.bf16.mxu0 0
    %1663 = vmatpush1.bf16.msra.mxu0 %v1591
    %1664 = vmatprep.subr.bf16.mxu0 0
    %1665 = vmatpush1.bf16.msra.mxu0 %v1592
    %1666 = vmatprep.subr.bf16.mxu0 0
    %1667 = vmatpush1.bf16.msra.mxu0 %v1593
    %1668 = vmatprep.subr.bf16.mxu0 0
    %1669 = vmatpush1.bf16.msra.mxu0 %v1594
    %1670 = vmatprep.subr.bf16.mxu0 0
    %1671 = vmatpush1.bf16.msra.mxu0 %v1595
    %1672 = vmatprep.subr.bf16.mxu0 0
    %1673 = vmatpush1.bf16.msra.mxu0 %v1596
    %1674 = vmatprep.subr.bf16.mxu0 0
    %1675 = vmatpush1.bf16.msra.mxu0 %v1597
    %1676 = vmatprep.subr.bf16.mxu0 0
    %1677 = vmatpush1.bf16.msra.mxu0 %v1598
    %1678 = vmatprep.subr.bf16.mxu0 0
    %1679 = vmatpush1.bf16.msra.mxu0 %v1599
    %1680 = vmatprep.mubr.bf16.mxu0 %v1577
    %1681 = vmatmul.mubr.bf16.gmra.mrb[0].mxu0 %v1576
    %v1682 = vpop.f32.mrb[0].mxu0
    %v1683 = vadd.f32 0.0, %v1682
    %v1684 = vpop.f32.mrb[0].mxu0
    %v1685 = vpop.f32.mrb[0].mxu0
    %v1686 = vpop.f32.mrb[0].mxu0
    %1687 = vdwg.mxu0
    %1688 = vmatprep.subr.bf16.mxu0 0
    %1689 = vmatpush1.bf16.msra.mxu0 %v1600
    %1690 = vmatprep.subr.bf16.mxu0 0
    %1691 = vmatpush1.bf16.msra.mxu0 %v1601
    %1692 = vmatprep.subr.bf16.mxu0 0
    %1693 = vmatpush1.bf16.msra.mxu0 %v1602
    %1694 = vmatprep.subr.bf16.mxu0 0
    %1695 = vmatpush1.bf16.msra.mxu0 %v1603
    %1696 = vmatprep.subr.bf16.mxu0 0
    %1697 = vmatpush1.bf16.msra.mxu0 %v1604
    %1698 = vmatprep.subr.bf16.mxu0 0
    %1699 = vmatpush1.bf16.msra.mxu0 %v1605
    %1700 = vmatprep.subr.bf16.mxu0 0
    %1701 = vmatpush1.bf16.msra.mxu0 %v1606
    %1702 = vmatprep.subr.bf16.mxu0 0
    %1703 = vmatpush1.bf16.msra.mxu0 %v1607
    %1704 = vmatprep.subr.bf16.mxu0 0
    %1705 = vmatpush1.bf16.msra.mxu0 %v1608
    %1706 = vmatprep.subr.bf16.mxu0 0
    %1707 = vmatpush1.bf16.msra.mxu0 %v1609
    %1708 = vmatprep.subr.bf16.mxu0 0
    %1709 = vmatpush1.bf16.msra.mxu0 %v1610
    %1710 = vmatprep.subr.bf16.mxu0 0
    %1711 = vmatpush1.bf16.msra.mxu0 %v1611
    %1712 = vmatprep.subr.bf16.mxu0 0
    %1713 = vmatpush1.bf16.msra.mxu0 %v1612
    %1714 = vmatprep.subr.bf16.mxu0 0
    %1715 = vmatpush1.bf16.msra.mxu0 %v1613
    %1716 = vmatprep.subr.bf16.mxu0 0
    %1717 = vmatpush1.bf16.msra.mxu0 %v1614
    %1718 = vmatprep.subr.bf16.mxu0 0
    %1719 = vmatpush1.bf16.msra.mxu0 %v1615
    %1720 = vmatprep.mubr.bf16.mxu0 %v1579
    %1721 = vmatmul.mubr.bf16.gmra.mrb[0].mxu0 %v1578
    %v1722 = vpop.f32.mrb[0].mxu0
    %v1723 = vadd.f32 %v1683, %v1722
    %v1724 = vpop.f32.mrb[0].mxu0
    %v1725 = vpop.f32.mrb[0].mxu0
    %v1726 = vpop.f32.mrb[0].mxu0
    %1727 = vdwg.mxu0
    %1728 = vmatprep.subr.bf16.mxu0 0
    %1729 = vmatpush1.bf16.msra.mxu0 %v1616
    %1730 = vmatprep.subr.bf16.mxu0 0
    %1731 = vmatpush1.bf16.msra.mxu0 %v1617
    %1732 = vmatprep.subr.bf16.mxu0 0
    %1733 = vmatpush1.bf16.msra.mxu0 %v1618
    %1734 = vmatprep.subr.bf16.mxu0 0
    %1735 = vmatpush1.bf16.msra.mxu0 %v1619
    %1736 = vmatprep.subr.bf16.mxu0 0
    %1737 = vmatpush1.bf16.msra.mxu0 %v1620
    %1738 = vmatprep.subr.bf16.mxu0 0
    %1739 = vmatpush1.bf16.msra.mxu0 %v1621
    %1740 = vmatprep.subr.bf16.mxu0 0
    %1741 = vmatpush1.bf16.msra.mxu0 %v1622
    %1742 = vmatprep.subr.bf16.mxu0 0
    %1743 = vmatpush1.bf16.msra.mxu0 %v1623
    %1744 = vmatprep.subr.bf16.mxu0 0
    %1745 = vmatpush1.bf16.msra.mxu0 %v1624
    %1746 = vmatprep.subr.bf16.mxu0 0
    %1747 = vmatpush1.bf16.msra.mxu0 %v1625
    %1748 = vmatprep.subr.bf16.mxu0 0
    %1749 = vmatpush1.bf16.msra.mxu0 %v1626
    %1750 = vmatprep.subr.bf16.mxu0 0
    %1751 = vmatpush1.bf16.msra.mxu0 %v1627
    %1752 = vmatprep.subr.bf16.mxu0 0
    %1753 = vmatpush1.bf16.msra.mxu0 %v1628
    %1754 = vmatprep.subr.bf16.mxu0 0
    %1755 = vmatpush1.bf16.msra.mxu0 %v1629
    %1756 = vmatprep.subr.bf16.mxu0 0
    %1757 = vmatpush1.bf16.msra.mxu0 %v1630
    %1758 = vmatprep.subr.bf16.mxu0 0
    %1759 = vmatpush1.bf16.msra.mxu0 %v1631
    %1760 = vmatprep.mubr.bf16.mxu0 %v1581
    %1761 = vmatmul.mubr.bf16.gmra.mrb[0].mxu0 %v1580
    %v1762 = vpop.f32.mrb[0].mxu0
    %v1763 = vadd.f32 %v1723, %v1762
    %v1764 = vpop.f32.mrb[0].mxu0
    %v1765 = vpop.f32.mrb[0].mxu0
    %v1766 = vpop.f32.mrb[0].mxu0
    %1767 = vdwg.mxu0
    %1768 = vmatprep.subr.bf16.mxu0 0
    %1769 = vmatpush1.bf16.msra.mxu0 %v1632
    %1770 = vmatprep.subr.bf16.mxu0 0
    %1771 = vmatpush1.bf16.msra.mxu0 %v1633
    %1772 = vmatprep.subr.bf16.mxu0 0
    %1773 = vmatpush1.bf16.msra.mxu0 %v1634
    %1774 = vmatprep.subr.bf16.mxu0 0
    %1775 = vmatpush1.bf16.msra.mxu0 %v1635
    %1776 = vmatprep.subr.bf16.mxu0 0
    %1777 = vmatpush1.bf16.msra.mxu0 %v1636
    %1778 = vmatprep.subr.bf16.mxu0 0
    %1779 = vmatpush1.bf16.msra.mxu0 %v1637
    %1780 = vmatprep.subr.bf16.mxu0 0
    %1781 = vmatpush1.bf16.msra.mxu0 %v1638
    %1782 = vmatprep.subr.bf16.mxu0 0
    %1783 = vmatpush1.bf16.msra.mxu0 %v1639
    %1784 = vmatprep.subr.bf16.mxu0 0
    %1785 = vmatpush1.bf16.msra.mxu0 %v1640
    %1786 = vmatprep.subr.bf16.mxu0 0
    %1787 = vmatpush1.bf16.msra.mxu0 %v1641
    %1788 = vmatprep.subr.bf16.mxu0 0
    %1789 = vmatpush1.bf16.msra.mxu0 %v1642
    %1790 = vmatprep.subr.bf16.mxu0 0
    %1791 = vmatpush1.bf16.msra.mxu0 %v1643
    %1792 = vmatprep.subr.bf16.mxu0 0
    %1793 = vmatpush1.bf16.msra.mxu0 %v1644
    %1794 = vmatprep.subr.bf16.mxu0 0
    %1795 = vmatpush1.bf16.msra.mxu0 %v1645
    %1796 = vmatprep.subr.bf16.mxu0 0
    %1797 = vmatpush1.bf16.msra.mxu0 %v1646
    %1798 = vmatprep.subr.bf16.mxu0 0
    %1799 = vmatpush1.bf16.msra.mxu0 %v1647
    %1800 = vmatprep.mubr.bf16.mxu0 %v1583
    %1801 = vmatmul.mubr.bf16.gmra.mrb[0].mxu0 %v1582
    %v1802 = vpop.f32.mrb[0].mxu0
    %v1803 = vadd.f32 %v1763, %v1802
    %v1804 = vpop.f32.mrb[0].mxu0
    %v1805 = vpop.f32.mrb[0].mxu0
    %v1806 = vpop.f32.mrb[0].mxu0
    %1807 = vdwg.mxu0
    %v1808 = vadd.f32 %v1527, %v1803
    %s1809 = sshll.u32 %s959, 4
    %1810 = dma.done %s70, %s1809
    %v1811 = vld [vmem:[#allocation5 + $0x30] sm:$0xff]
    %v1812 = vld [vmem:[#allocation5 + $0x38] sm:$0xff]
    %v1815 = vcombine.high %v1811, %v1811
    %v1817 = vunpack.c.l.s4 1983009808
    %v1818 = vunpack.c.0.s8 %v1817
    %v1819 = vlaneseq
    %v1820 = vshrl.u32 %v1819, 7
    %v1821 = vsub.s32 %v1818, %v1820
    %v1822 = vrot.slane %v1811, %v1821
    %v1824 = vunpack.c.l.s4 1983009808
    %v1825 = vunpack.c.0.s8 %v1824
    %v1826 = vlaneseq
    %v1827 = vshrl.u32 %v1826, 7
    %v1828 = vsub.s32 %v1825, %v1827
    %v1829 = vrot.slane %v1815, %v1828
    %v1830 = vcombine.high %v1822, %v1822
    %v1831 = vcombine.high %v1829, %v1829
    %v1832 = vcombine.high %v1812, %v1812
    %v1834 = vunpack.c.l.s4 1983009808
    %v1835 = vunpack.c.0.s8 %v1834
    %v1836 = vlaneseq
    %v1837 = vshrl.u32 %v1836, 7
    %v1838 = vsub.s32 %v1835, %v1837
    %v1839 = vrot.slane %v1812, %v1838
    %v1841 = vunpack.c.l.s4 1983009808
    %v1842 = vunpack.c.0.s8 %v1841
    %v1843 = vlaneseq
    %v1844 = vshrl.u32 %v1843, 7
    %v1845 = vsub.s32 %v1842, %v1844
    %v1846 = vrot.slane %v1832, %v1845
    %v1847 = vcombine.high %v1839, %v1839
    %v1848 = vcombine.high %v1846, %v1846
    %v1857 = vpack.c.bf16 %v1822, %v1822
    %v1858 = vpack.c.bf16 %v1830, %v1830
    %v1859 = vpack.c.bf16 %v1829, %v1829
    %v1860 = vpack.c.bf16 %v1831, %v1831
    %v1861 = vpack.c.bf16 %v1839, %v1839
    %v1862 = vpack.c.bf16 %v1847, %v1847
    %v1863 = vpack.c.bf16 %v1846, %v1846
    %v1864 = vpack.c.bf16 %v1848, %v1848
    %v1865 = vld [vmem:[%s69] sm:$0xff]
    %v1866 = vld [vmem:[%s69 + $0x8] sm:$0xff]
    %v1867 = vld [vmem:[%s69 + $0x10] sm:$0xff]
    %v1868 = vld [vmem:[%s69 + $0x18] sm:$0xff]
    %v1869 = vld [vmem:[%s69 + $0x20] sm:$0xff]
    %v1870 = vld [vmem:[%s69 + $0x28] sm:$0xff]
    %v1871 = vld [vmem:[%s69 + $0x30] sm:$0xff]
    %v1872 = vld [vmem:[%s69 + $0x38] sm:$0xff]
    %v1873 = vld [vmem:[%s69 + $0x40] sm:$0xff]
    %v1874 = vld [vmem:[%s69 + $0x48] sm:$0xff]
    %v1875 = vld [vmem:[%s69 + $0x50] sm:$0xff]
    %v1876 = vld [vmem:[%s69 + $0x58] sm:$0xff]
    %v1877 = vld [vmem:[%s69 + $0x60] sm:$0xff]
    %v1878 = vld [vmem:[%s69 + $0x68] sm:$0xff]
    %v1879 = vld [vmem:[%s69 + $0x70] sm:$0xff]
    %v1880 = vld [vmem:[%s69 + $0x78] sm:$0xff]
    %v1881 = vld [vmem:[%s69 + $0x80] sm:$0xff]
    %v1882 = vld [vmem:[%s69 + $0x88] sm:$0xff]
    %v1883 = vld [vmem:[%s69 + $0x90] sm:$0xff]
    %v1884 = vld [vmem:[%s69 + $0x98] sm:$0xff]
    %v1885 = vld [vmem:[%s69 + $0xa0] sm:$0xff]
    %v1886 = vld [vmem:[%s69 + $0xa8] sm:$0xff]
    %v1887 = vld [vmem:[%s69 + $0xb0] sm:$0xff]
    %v1888 = vld [vmem:[%s69 + $0xb8] sm:$0xff]
    %v1889 = vld [vmem:[%s69 + $0xc0] sm:$0xff]
    %v1890 = vld [vmem:[%s69 + $0xc8] sm:$0xff]
    %v1891 = vld [vmem:[%s69 + $0xd0] sm:$0xff]
    %v1892 = vld [vmem:[%s69 + $0xd8] sm:$0xff]
    %v1893 = vld [vmem:[%s69 + $0xe0] sm:$0xff]
    %v1894 = vld [vmem:[%s69 + $0xe8] sm:$0xff]
    %v1895 = vld [vmem:[%s69 + $0xf0] sm:$0xff]
    %v1896 = vld [vmem:[%s69 + $0xf8] sm:$0xff]
    %v1897 = vld [vmem:[%s69 + $0x100] sm:$0xff]
    %v1898 = vld [vmem:[%s69 + $0x108] sm:$0xff]
    %v1899 = vld [vmem:[%s69 + $0x110] sm:$0xff]
    %v1900 = vld [vmem:[%s69 + $0x118] sm:$0xff]
    %v1901 = vld [vmem:[%s69 + $0x120] sm:$0xff]
    %v1902 = vld [vmem:[%s69 + $0x128] sm:$0xff]
    %v1903 = vld [vmem:[%s69 + $0x130] sm:$0xff]
    %v1904 = vld [vmem:[%s69 + $0x138] sm:$0xff]
    %v1905 = vld [vmem:[%s69 + $0x140] sm:$0xff]
    %v1906 = vld [vmem:[%s69 + $0x148] sm:$0xff]
    %v1907 = vld [vmem:[%s69 + $0x150] sm:$0xff]
    %v1908 = vld [vmem:[%s69 + $0x158] sm:$0xff]
    %v1909 = vld [vmem:[%s69 + $0x160] sm:$0xff]
    %v1910 = vld [vmem:[%s69 + $0x168] sm:$0xff]
    %v1911 = vld [vmem:[%s69 + $0x170] sm:$0xff]
    %v1912 = vld [vmem:[%s69 + $0x178] sm:$0xff]
    %v1913 = vld [vmem:[%s69 + $0x180] sm:$0xff]
    %v1914 = vld [vmem:[%s69 + $0x188] sm:$0xff]
    %v1915 = vld [vmem:[%s69 + $0x190] sm:$0xff]
    %v1916 = vld [vmem:[%s69 + $0x198] sm:$0xff]
    %v1917 = vld [vmem:[%s69 + $0x1a0] sm:$0xff]
    %v1918 = vld [vmem:[%s69 + $0x1a8] sm:$0xff]
    %v1919 = vld [vmem:[%s69 + $0x1b0] sm:$0xff]
    %v1920 = vld [vmem:[%s69 + $0x1b8] sm:$0xff]
    %v1921 = vld [vmem:[%s69 + $0x1c0] sm:$0xff]
    %v1922 = vld [vmem:[%s69 + $0x1c8] sm:$0xff]
    %v1923 = vld [vmem:[%s69 + $0x1d0] sm:$0xff]
    %v1924 = vld [vmem:[%s69 + $0x1d8] sm:$0xff]
    %v1925 = vld [vmem:[%s69 + $0x1e0] sm:$0xff]
    %v1926 = vld [vmem:[%s69 + $0x1e8] sm:$0xff]
    %v1927 = vld [vmem:[%s69 + $0x1f0] sm:$0xff]
    %v1928 = vld [vmem:[%s69 + $0x1f8] sm:$0xff]
    %1929 = vmatprep.subr.bf16.mxu0 0
    %1930 = vmatpush1.bf16.msra.mxu0 %v1865
    %1931 = vmatprep.subr.bf16.mxu0 0
    %1932 = vmatpush1.bf16.msra.mxu0 %v1866
    %1933 = vmatprep.subr.bf16.mxu0 0
    %1934 = vmatpush1.bf16.msra.mxu0 %v1867
    %1935 = vmatprep.subr.bf16.mxu0 0
    %1936 = vmatpush1.bf16.msra.mxu0 %v1868
    %1937 = vmatprep.subr.bf16.mxu0 0
    %1938 = vmatpush1.bf16.msra.mxu0 %v1869
    %1939 = vmatprep.subr.bf16.mxu0 0
    %1940 = vmatpush1.bf16.msra.mxu0 %v1870
    %1941 = vmatprep.subr.bf16.mxu0 0
    %1942 = vmatpush1.bf16.msra.mxu0 %v1871
    %1943 = vmatprep.subr.bf16.mxu0 0
    %1944 = vmatpush1.bf16.msra.mxu0 %v1872
    %1945 = vmatprep.subr.bf16.mxu0 0
    %1946 = vmatpush1.bf16.msra.mxu0 %v1873
    %1947 = vmatprep.subr.bf16.mxu0 0
    %1948 = vmatpush1.bf16.msra.mxu0 %v1874
    %1949 = vmatprep.subr.bf16.mxu0 0
    %1950 = vmatpush1.bf16.msra.mxu0 %v1875
    %1951 = vmatprep.subr.bf16.mxu0 0
    %1952 = vmatpush1.bf16.msra.mxu0 %v1876
    %1953 = vmatprep.subr.bf16.mxu0 0
    %1954 = vmatpush1.bf16.msra.mxu0 %v1877
    %1955 = vmatprep.subr.bf16.mxu0 0
    %1956 = vmatpush1.bf16.msra.mxu0 %v1878
    %1957 = vmatprep.subr.bf16.mxu0 0
    %1958 = vmatpush1.bf16.msra.mxu0 %v1879
    %1959 = vmatprep.subr.bf16.mxu0 0
    %1960 = vmatpush1.bf16.msra.mxu0 %v1880
    %1961 = vmatprep.mubr.bf16.mxu0 %v1858
    %1962 = vmatmul.mubr.bf16.gmra.mrb[0].mxu0 %v1857
    %v1963 = vpop.f32.mrb[0].mxu0
    %v1964 = vadd.f32 0.0, %v1963
    %v1965 = vpop.f32.mrb[0].mxu0
    %v1966 = vpop.f32.mrb[0].mxu0
    %v1967 = vpop.f32.mrb[0].mxu0
    %1968 = vdwg.mxu0
    %1969 = vmatprep.subr.bf16.mxu0 0
    %1970 = vmatpush1.bf16.msra.mxu0 %v1881
    %1971 = vmatprep.subr.bf16.mxu0 0
    %1972 = vmatpush1.bf16.msra.mxu0 %v1882
    %1973 = vmatprep.subr.bf16.mxu0 0
    %1974 = vmatpush1.bf16.msra.mxu0 %v1883
    %1975 = vmatprep.subr.bf16.mxu0 0
    %1976 = vmatpush1.bf16.msra.mxu0 %v1884
    %1977 = vmatprep.subr.bf16.mxu0 0
    %1978 = vmatpush1.bf16.msra.mxu0 %v1885
    %1979 = vmatprep.subr.bf16.mxu0 0
    %1980 = vmatpush1.bf16.msra.mxu0 %v1886
    %1981 = vmatprep.subr.bf16.mxu0 0
    %1982 = vmatpush1.bf16.msra.mxu0 %v1887
    %1983 = vmatprep.subr.bf16.mxu0 0
    %1984 = vmatpush1.bf16.msra.mxu0 %v1888
    %1985 = vmatprep.subr.bf16.mxu0 0
    %1986 = vmatpush1.bf16.msra.mxu0 %v1889
    %1987 = vmatprep.subr.bf16.mxu0 0
    %1988 = vmatpush1.bf16.msra.mxu0 %v1890
    %1989 = vmatprep.subr.bf16.mxu0 0
    %1990 = vmatpush1.bf16.msra.mxu0 %v1891
    %1991 = vmatprep.subr.bf16.mxu0 0
    %1992 = vmatpush1.bf16.msra.mxu0 %v1892
    %1993 = vmatprep.subr.bf16.mxu0 0
    %1994 = vmatpush1.bf16.msra.mxu0 %v1893
    %1995 = vmatprep.subr.bf16.mxu0 0
    %1996 = vmatpush1.bf16.msra.mxu0 %v1894
    %1997 = vmatprep.subr.bf16.mxu0 0
    %1998 = vmatpush1.bf16.msra.mxu0 %v1895
    %1999 = vmatprep.subr.bf16.mxu0 0
    %2000 = vmatpush1.bf16.msra.mxu0 %v1896
    %2001 = vmatprep.mubr.bf16.mxu0 %v1860
    %2002 = vmatmul.mubr.bf16.gmra.mrb[0].mxu0 %v1859
    %v2003 = vpop.f32.mrb[0].mxu0
    %v2004 = vadd.f32 %v1964, %v2003
    %v2005 = vpop.f32.mrb[0].mxu0
    %v2006 = vpop.f32.mrb[0].mxu0
    %v2007 = vpop.f32.mrb[0].mxu0
    %2008 = vdwg.mxu0
    %2009 = vmatprep.subr.bf16.mxu0 0
    %2010 = vmatpush1.bf16.msra.mxu0 %v1897
    %2011 = vmatprep.subr.bf16.mxu0 0
    %2012 = vmatpush1.bf16.msra.mxu0 %v1898
    %2013 = vmatprep.subr.bf16.mxu0 0
    %2014 = vmatpush1.bf16.msra.mxu0 %v1899
    %2015 = vmatprep.subr.bf16.mxu0 0
    %2016 = vmatpush1.bf16.msra.mxu0 %v1900
    %2017 = vmatprep.subr.bf16.mxu0 0
    %2018 = vmatpush1.bf16.msra.mxu0 %v1901
    %2019 = vmatprep.subr.bf16.mxu0 0
    %2020 = vmatpush1.bf16.msra.mxu0 %v1902
    %2021 = vmatprep.subr.bf16.mxu0 0
    %2022 = vmatpush1.bf16.msra.mxu0 %v1903
    %2023 = vmatprep.subr.bf16.mxu0 0
    %2024 = vmatpush1.bf16.msra.mxu0 %v1904
    %2025 = vmatprep.subr.bf16.mxu0 0
    %2026 = vmatpush1.bf16.msra.mxu0 %v1905
    %2027 = vmatprep.subr.bf16.mxu0 0
    %2028 = vmatpush1.bf16.msra.mxu0 %v1906
    %2029 = vmatprep.subr.bf16.mxu0 0
    %2030 = vmatpush1.bf16.msra.mxu0 %v1907
    %2031 = vmatprep.subr.bf16.mxu0 0
    %2032 = vmatpush1.bf16.msra.mxu0 %v1908
    %2033 = vmatprep.subr.bf16.mxu0 0
    %2034 = vmatpush1.bf16.msra.mxu0 %v1909
    %2035 = vmatprep.subr.bf16.mxu0 0
    %2036 = vmatpush1.bf16.msra.mxu0 %v1910
    %2037 = vmatprep.subr.bf16.mxu0 0
    %2038 = vmatpush1.bf16.msra.mxu0 %v1911
    %2039 = vmatprep.subr.bf16.mxu0 0
    %2040 = vmatpush1.bf16.msra.mxu0 %v1912
    %2041 = vmatprep.mubr.bf16.mxu0 %v1862
    %2042 = vmatmul.mubr.bf16.gmra.mrb[0].mxu0 %v1861
    %v2043 = vpop.f32.mrb[0].mxu0
    %v2044 = vadd.f32 %v2004, %v2043
    %v2045 = vpop.f32.mrb[0].mxu0
    %v2046 = vpop.f32.mrb[0].mxu0
    %v2047 = vpop.f32.mrb[0].mxu0
    %2048 = vdwg.mxu0
    %2049 = vmatprep.subr.bf16.mxu0 0
    %2050 = vmatpush1.bf16.msra.mxu0 %v1913
    %2051 = vmatprep.subr.bf16.mxu0 0
    %2052 = vmatpush1.bf16.msra.mxu0 %v1914
    %2053 = vmatprep.subr.bf16.mxu0 0
    %2054 = vmatpush1.bf16.msra.mxu0 %v1915
    %2055 = vmatprep.subr.bf16.mxu0 0
    %2056 = vmatpush1.bf16.msra.mxu0 %v1916
    %2057 = vmatprep.subr.bf16.mxu0 0
    %2058 = vmatpush1.bf16.msra.mxu0 %v1917
    %2059 = vmatprep.subr.bf16.mxu0 0
    %2060 = vmatpush1.bf16.msra.mxu0 %v1918
    %2061 = vmatprep.subr.bf16.mxu0 0
    %2062 = vmatpush1.bf16.msra.mxu0 %v1919
    %2063 = vmatprep.subr.bf16.mxu0 0
    %2064 = vmatpush1.bf16.msra.mxu0 %v1920
    %2065 = vmatprep.subr.bf16.mxu0 0
    %2066 = vmatpush1.bf16.msra.mxu0 %v1921
    %2067 = vmatprep.subr.bf16.mxu0 0
    %2068 = vmatpush1.bf16.msra.mxu0 %v1922
    %2069 = vmatprep.subr.bf16.mxu0 0
    %2070 = vmatpush1.bf16.msra.mxu0 %v1923
    %2071 = vmatprep.subr.bf16.mxu0 0
    %2072 = vmatpush1.bf16.msra.mxu0 %v1924
    %2073 = vmatprep.subr.bf16.mxu0 0
    %2074 = vmatpush1.bf16.msra.mxu0 %v1925
    %2075 = vmatprep.subr.bf16.mxu0 0
    %2076 = vmatpush1.bf16.msra.mxu0 %v1926
    %2077 = vmatprep.subr.bf16.mxu0 0
    %2078 = vmatpush1.bf16.msra.mxu0 %v1927
    %2079 = vmatprep.subr.bf16.mxu0 0
    %2080 = vmatpush1.bf16.msra.mxu0 %v1928
    %2081 = vmatprep.mubr.bf16.mxu0 %v1864
    %2082 = vmatmul.mubr.bf16.gmra.mrb[0].mxu0 %v1863
    %v2083 = vpop.f32.mrb[0].mxu0
    %v2084 = vadd.f32 %v2044, %v2083
    %v2085 = vpop.f32.mrb[0].mxu0
    %v2086 = vpop.f32.mrb[0].mxu0
    %v2087 = vpop.f32.mrb[0].mxu0
    %2088 = vdwg.mxu0
    %v2089 = vadd.f32 %v1808, %v2084
    %2090 = vst [vmem:[#allocation7] sm:$0x3] %v2089
    // Predicated region
    $region46: #{perception_layer_pallas.1} parent=1 // pred_check
      _
    $region47: #{perception_layer_pallas.1} parent=1 // pred_check_branch
      %2092 = sbr.rel (0) target = $region49
    $region48: #{perception_layer_pallas.1} parent=1 // pred_region
      %s2094 = ssub.s32 32, 32
      %2095 = vsyncadd [#allocation8], %s2094
      %s2097 = sshll.u32 [#allocation7], 4
      %s2098 = int_to_ptr.vmem [resolvable:$true] %s2097
      %2100 = dma.vmem_to_hbm [thread:$0]  %s2098, 32, %s8, [#allocation8]
    $region49: #{perception_layer_pallas.1} parent=1 // pred_fallthru
      _
    // Predicated region
    $region50: #{perception_layer_pallas.1} parent=1 // pred_check
      _
    $region51: #{perception_layer_pallas.1} parent=1 // pred_check_branch
      %2102 = sbr.rel (0) target = $region53
    $region52: #{perception_layer_pallas.1} parent=1 // pred_region
      %2103 = dma.done [#allocation8], 32
    $region53: #{perception_layer_pallas.1} parent=1 // pred_fallthru
      _
    %2104 = vsyncpa [#allocation8], 1
  %2105 = vsyncmov [#allocation6]
  %s2106 = vpop.sfrf %2105
  %p2107 = scmp.eq.s32.totalorder %s2106, 0
  %p2108 = pneg %p2107
  %2110 = shalt.err (%p2108)
  %s2111 = scalar_lea.sflag [#allocation6], 1
  %2112 = vsyncmov %s2111
  %s2113 = vpop.sfrf %2112
  %p2114 = scmp.eq.s32.totalorder %s2113, 0
  %p2115 = pneg %p2114
  %2117 = shalt.err (%p2115)
  %s2118 = scalar_lea.sflag [#allocation6], 2
  %2119 = vsyncmov %s2118
  %s2120 = vpop.sfrf %2119
  %p2121 = scmp.eq.s32.totalorder %s2120, 0
  %p2122 = pneg %p2121
  %2124 = shalt.err (%p2122)
  %s2125 = scalar_lea.sflag [#allocation6], 3
  %2126 = vsyncmov %s2125
  %s2127 = vpop.sfrf %2126
  %p2128 = scmp.eq.s32.totalorder %s2127, 0
  %p2129 = pneg %p2128
  %2131 = shalt.err (%p2129)

</llo_original>
